<compile_context>
chip_gen: v7x
topology: tpu7x:2x2x1
jax: 0.10.0
libtpu: 0.0.40
codegen_flags: <defaults>
</compile_context>

<pallas_src>
from functools import partial

import numpy as np
import jax
import jax.numpy as jnp
from jax.experimental import pallas as pl
from jax.experimental.pallas import tpu as pltpu

# ----- model hyper-params (small, consistent with the module) -----
VOCAB = 50          # input_size == output_size == len(vocab)
VOCAB_PAD = 64      # one-hot width for the in-kernel embedding matmul
HIDDEN = 32         # hidden_size
N_LAYERS = 2        # n_layers
BATCH = 2
SEQ = 8             # padded sequence length (== max(lengths) in the example)
V_PAD = 128         # lane-dense logits width; sliced back to VOCAB in wrapper


# ------------------------- fused Pallas kernel -------------------------

def chatbot_fused_kernel(ints_ref, hc0_ref, w_ref, b_ref, logits_ref, hcn_ref):
    """Embedding -> LSTM l0 -> LSTM l1 -> FC, fully fused, grid-less.

    ints_ref:   (T*B + B, 1) int32  [time-major token ids ; lengths]
    hc0_ref:    (4*B, H)            [h_l0 ; h_l1 ; c_l0 ; c_l1]
    w_ref:      (VOCAB_PAD + 4H, 128) packed weight slab (see prepare_params)
    b_ref:      (3, 128)            [b_l0 ; b_l1 ; b_fc(padded)]
    logits_ref: (B*T, 128)          batch-major, lane-dense
    hcn_ref:    (4*B, H)            final states, same layout as hc0_ref
    """
    H = hc0_ref.shape[1]
    B = hc0_ref.shape[0] // (2 * N_LAYERS)
    TB = ints_ref.shape[0] - B
    T = TB // B
    VPAD_IN = w_ref.shape[0] - 4 * H            # one-hot / embedding row count

    ids = ints_ref[0:TB, :]                     # (T*B, 1) int32, time-major
    lens = ints_ref[TB:TB + B, :]               # (B, 1)   int32

    # packed weight slab (pre-transposed / pre-fused on the host, one time)
    r0 = VPAD_IN
    emb_w0 = w_ref[0:r0, :]                     # embedding @ W_ih_l0^T  (64,128)
    whh0_t = w_ref[r0:r0 + H, :]                # W_hh_l0^T              (32,128)
    w1_cat = w_ref[r0 + H:r0 + 3 * H, :]        # [W_ih_l1^T ; W_hh_l1^T](64,128)
    wfc = w_ref[r0 + 3 * H:r0 + 4 * H, :]       # W_fc^T zero-padded     (32,128)
    b0 = b_ref[0:1, :]
    b1 = b_ref[1:2, :]
    bfc = b_ref[2:3, :]

    h_l0 = hc0_ref[0:B, :]
    h_l1 = hc0_ref[B:2 * B, :]
    c_l0 = hc0_ref[2 * B:3 * B, :]
    c_l1 = hc0_ref[3 * B:4 * B, :]

    # ---- fused embedding lookup + layer-0 input projection: ONE MXU matmul ----
    onehot = (jax.lax.broadcasted_iota(jnp.int32, (TB, VPAD_IN), 1)
              == ids).astype(jnp.float32)                        # (T*B, 64)
    gx0 = jnp.dot(onehot, emb_w0, preferred_element_type=jnp.float32) + b0

    def lstm_cell(gates, c):
        # one full-vreg sigmoid (single EUP push) + tanh only on the g block
        sig = jax.nn.sigmoid(gates)
        g_g = jnp.tanh(gates[:, 2 * H:3 * H])
        c_new = sig[:, H:2 * H] * c + sig[:, 0:H] * g_g
        h_new = sig[:, 3 * H:4 * H] * jnp.tanh(c_new)
        return h_new, c_new

    # ---- layer 0: fully unrolled, register-resident per-step outputs ----
    ys0 = []
    h, c = h_l0, c_l0
    for t in range(T):                                           # static unroll
        gates = gx0[t * B:(t + 1) * B, :] + jnp.dot(
            h, whh0_t, preferred_element_type=jnp.float32)       # (B, 4H)
        h_new, c_new = lstm_cell(gates, c)
        valid = lens > t                                         # (B,1) bool
        h = jnp.where(valid, h_new, h)                           # freeze past end
        c = jnp.where(valid, c_new, c)
        ys0.append(valid.astype(jnp.float32) * h_new)            # pad steps -> 0
    h0f, c0f = h, c

    # ---- layer 1: per-step fused input+recurrent matmul.  Step t depends only
    # on ys0[t] and h1[t-1]; single-basic-block trace lets the scheduler
    # wavefront the two layers and hide MXU result latency. ----
    ys1 = []
    h, c = h_l1, c_l1
    for t in range(T):
        inp = jnp.concatenate([ys0[t], h], axis=1)               # (B, 2H)
        gates = jnp.dot(inp, w1_cat, preferred_element_type=jnp.float32) + b1
        h_new, c_new = lstm_cell(gates, c)
        valid = lens > t
        h = jnp.where(valid, h_new, h)
        c = jnp.where(valid, c_new, c)
        ys1.append(valid.astype(jnp.float32) * h_new)
    h1f, c1f = h, c

    # ---- FC epilogue: batch-major, lane-dense logits, single store ----
    rows = [ys1[t][b:b + 1, :] for b in range(B) for t in range(T)]
    y_bm = jnp.concatenate(rows, axis=0)                         # (B*T, H)
    logits_ref[...] = (jnp.dot(y_bm, wfc, preferred_element_type=jnp.float32)
                       + bfc).astype(logits_ref.dtype)

    # final (last-valid-step) states, written once
    hcn_ref[0:B, :] = h0f
    hcn_ref[B:2 * B, :] = h1f
    hcn_ref[2 * B:3 * B, :] = c0f
    hcn_ref[3 * B:4 * B, :] = c1f


# ------------------------- one-time param prep -------------------------

def prepare_params(params):
    """Pack all weights into two slabs (run once, outside the per-call jit)."""
    H = HIDDEN
    hp = jax.lax.Precision.HIGHEST
    emb_pad = jnp.zeros((VOCAB_PAD, H), jnp.float32).at[:VOCAB].set(
        params["embedding"])
    # fuse embedding lookup with layer-0 input projection: onehot @ (emb @ Wih0^T)
    emb_w0 = jnp.dot(emb_pad, params["w_ih_l0"].T, precision=hp)     # (64, 4H)
    w1_cat = jnp.concatenate([params["w_ih_l1"].T,
                              params["w_hh_l1"].T], axis=0)          # (2H, 4H)
    wfc_pad = jnp.zeros((H, V_PAD), jnp.float32).at[:, :VOCAB].set(
        params["w_fc"].T)
    w_slab = jnp.concatenate(
        [emb_w0, params["w_hh_l0"].T, w1_cat, wfc_pad], axis=0)      # (192, 128)

    b0 = (params["b_ih_l0"] + params["b_hh_l0"]).reshape(1, 4 * H)
    b1 = (params["b_ih_l1"] + params["b_hh_l1"]).reshape(1, 4 * H)
    bfc_pad = jnp.zeros((1, V_PAD), jnp.float32).at[:, :VOCAB].set(
        params["b_fc"].reshape(1, VOCAB))
    b_slab = jnp.concatenate([b0, b1, bfc_pad], axis=0)              # (3, 128)
    return {"w_slab": w_slab, "b_slab": b_slab}


# ------------------------- wrapper -------------------------

@partial(jax.jit, static_argnames=("max_len",))
def chatbot_forward(prepped, input_seq, hidden_state, lengths, max_len):
    """Matches ChatbotModel.forward(input_seq, hidden_state, lengths)."""
    B, T = input_seq.shape
    H = HIDDEN

    ids_tm = input_seq.T.reshape(T * B, 1).astype(jnp.int32)   # time-major ids
    lens = lengths.reshape(B, 1).astype(jnp.int32)
    ints = jnp.concatenate([ids_tm, lens], axis=0)             # (T*B + B, 1)

    h0, c0 = hidden_state                                      # (L, B, H) each
    hc0 = jnp.concatenate([h0.reshape(N_LAYERS * B, H),
                           c0.reshape(N_LAYERS * B, H)], axis=0)

    logits_bm, hcn = pl.pallas_call(
        chatbot_fused_kernel,
        out_shape=(
            jax.ShapeDtypeStruct((B * T, V_PAD), jnp.float32),
            jax.ShapeDtypeStruct((2 * N_LAYERS * B, H), jnp.float32),
        ),
    )(ints, hc0, prepped["w_slab"], prepped["b_slab"])

    logits = logits_bm.reshape(B, T, V_PAD)[:, :max_len, :VOCAB]
    h_n = hcn[:N_LAYERS * B].reshape(N_LAYERS, B, H)
    c_n = hcn[N_LAYERS * B:].reshape(N_LAYERS, B, H)
    return logits, (h_n, c_n)


# ------------------------- pure-JAX reference -------------------------

def reference_forward(params, input_seq, hidden_state, lengths, max_len):
    B, T = input_seq.shape
    H = HIDDEN
    hp = jax.lax.Precision.HIGHEST
    x = jnp.take(params["embedding"], input_seq, axis=0).transpose(1, 0, 2)
    h_all, c_all = hidden_state
    lens = lengths.reshape(B, 1)
    h_fin, c_fin = [], []
    for layer in range(N_LAYERS):
        wih = params[f"w_ih_l{layer}"]
        whh = params[f"w_hh_l{layer}"]
        b = params[f"b_ih_l{layer}"] + params[f"b_hh_l{layer}"]
        h, c = h_all[layer], c_all[layer]
        ys = []
        for t in range(T):
            gates = (jnp.dot(x[t], wih.T, precision=hp)
                     + jnp.dot(h, whh.T, precision=hp) + b)
            i = jax.nn.sigmoid(gates[:, :H])
            f = jax.nn.sigmoid(gates[:, H:2 * H])
            g = jnp.tanh(gates[:, 2 * H:3 * H])
            o = jax.nn.sigmoid(gates[:, 3 * H:])
            c_new = f * c + i * g
            h_new = o * jnp.tanh(c_new)
            valid = t < lens
            h = jnp.where(valid, h_new, h)
            c = jnp.where(valid, c_new, c)
            ys.append(jnp.where(valid, h_new, 0.0))
        x = jnp.stack(ys, axis=0)
        h_fin.append(h)
        c_fin.append(c)
    out = x.transpose(1, 0, 2)[:, :max_len]
    logits = jnp.dot(out, params["w_fc"].T, precision=hp) + params["b_fc"]
    return logits, (jnp.stack(h_fin), jnp.stack(c_fin))


# ------------------------- parameter init -------------------------

def init_params(key):
    ks = jax.random.split(key, 3 + 4 * N_LAYERS)
    bound = 1.0 / np.sqrt(HIDDEN)
    params = {
        "embedding": jax.random.normal(ks[0], (VOCAB, HIDDEN), jnp.float32),
        "w_fc": jax.random.uniform(ks[1], (VOCAB, HIDDEN), jnp.float32,
                                   -bound, bound),
        "b_fc": jax.random.uniform(ks[2], (VOCAB,), jnp.float32, -bound, bound),
    }
    for layer in range(N_LAYERS):
        k = ks[3 + 4 * layer: 3 + 4 * (layer + 1)]
        params[f"w_ih_l{layer}"] = jax.random.uniform(
            k[0], (4 * HIDDEN, HIDDEN), jnp.float32, -bound, bound)
        params[f"w_hh_l{layer}"] = jax.random.uniform(
            k[1], (4 * HIDDEN, HIDDEN), jnp.float32, -bound, bound)
        params[f"b_ih_l{layer}"] = jax.random.uniform(
            k[2], (4 * HIDDEN,), jnp.float32, -bound, bound)
        params[f"b_hh_l{layer}"] = jax.random.uniform(
            k[3], (4 * HIDDEN,), jnp.float32, -bound, bound)
    return params


def init_hidden(batch_size):
    return (jnp.zeros((N_LAYERS, batch_size, HIDDEN), jnp.float32),
            jnp.zeros((N_LAYERS, batch_size, HIDDEN), jnp.float32))


# ------------------------- main -------------------------

if __name__ == "__main__":
    key = jax.random.PRNGKey(0)
    pkey, dkey = jax.random.split(key)

    params = init_params(pkey)
    prepped = prepare_params(params)          # one-time packing, not per call

    # token ids (B, T), variable lengths (max == T so pad_packed keeps SEQ)
    input_seq = jax.random.randint(dkey, (BATCH, SEQ), 0, VOCAB, jnp.int32)
    lengths_host = [SEQ, 5]
    lengths = jnp.array(lengths_host, dtype=jnp.int32)
    hidden_state = init_hidden(BATCH)
    max_len = int(max(lengths_host))          # static, host-side (no device sync)

    logits, (h_n, c_n) = chatbot_forward(prepped, input_seq, hidden_state,
                                         lengths, max_len)
    jax.block_until_ready((logits, h_n, c_n))

    assert logits.shape == (BATCH, max_len, VOCAB)
    assert h_n.shape == (N_LAYERS, BATCH, HIDDEN)
    assert c_n.shape == (N_LAYERS, BATCH, HIDDEN)

    # sanity check against a pure-JAX reference of the same forward pass
    ref_logits, (ref_h, ref_c) = reference_forward(
        params, input_seq, hidden_state, lengths, max_len)
    assert np.allclose(np.asarray(logits), np.asarray(ref_logits),
                       atol=5e-2, rtol=5e-2)
    assert np.allclose(np.asarray(h_n), np.asarray(ref_h),
                       atol=5e-2, rtol=5e-2)
    assert np.allclose(np.asarray(c_n), np.asarray(ref_c),
                       atol=5e-2, rtol=5e-2)

    print("KERNEL_OK")
</pallas_src>

<mosaic_0001>
module attributes {stable_mosaic.version = 11 : i64} {
  func.func @chatbot_fused_kernel(%arg0: memref<18x1xi32, #tpu.memory_space<vmem>>, %arg1: memref<8x32xf32, #tpu.memory_space<vmem>>, %arg2: memref<192x128xf32, #tpu.memory_space<vmem>>, %arg3: memref<3x128xf32, #tpu.memory_space<vmem>>, %arg4: memref<16x128xf32, #tpu.memory_space<vmem>>, %arg5: memref<8x32xf32, #tpu.memory_space<vmem>>) attributes {dimension_semantics = [], scalar_prefetch = 0 : i64, scratch_operands = 0 : i64, tpu.core_type = #tpu.core_type<tc>} {
    %c0 = arith.constant 0 : index
    %c0_0 = arith.constant 0 : index
    %0 = vector.load %arg0[%c0, %c0_0] : memref<18x1xi32, #tpu.memory_space<vmem>>, vector<16x1xi32>
    %c16 = arith.constant 16 : index
    %c0_1 = arith.constant 0 : index
    %1 = vector.load %arg0[%c16, %c0_1] : memref<18x1xi32, #tpu.memory_space<vmem>>, vector<2x1xi32>
    %c0_2 = arith.constant 0 : index
    %c0_3 = arith.constant 0 : index
    %2 = vector.load %arg2[%c0_2, %c0_3] : memref<192x128xf32, #tpu.memory_space<vmem>>, vector<64x128xf32>
    %c64 = arith.constant 64 : index
    %c0_4 = arith.constant 0 : index
    %3 = vector.load %arg2[%c64, %c0_4] : memref<192x128xf32, #tpu.memory_space<vmem>>, vector<32x128xf32>
    %c96 = arith.constant 96 : index
    %c0_5 = arith.constant 0 : index
    %4 = vector.load %arg2[%c96, %c0_5] : memref<192x128xf32, #tpu.memory_space<vmem>>, vector<64x128xf32>
    %c160 = arith.constant 160 : index
    %c0_6 = arith.constant 0 : index
    %5 = vector.load %arg2[%c160, %c0_6] : memref<192x128xf32, #tpu.memory_space<vmem>>, vector<32x128xf32>
    %c0_7 = arith.constant 0 : index
    %c0_8 = arith.constant 0 : index
    %6 = vector.load %arg3[%c0_7, %c0_8] : memref<3x128xf32, #tpu.memory_space<vmem>>, vector<1x128xf32>
    %c1 = arith.constant 1 : index
    %c0_9 = arith.constant 0 : index
    %7 = vector.load %arg3[%c1, %c0_9] : memref<3x128xf32, #tpu.memory_space<vmem>>, vector<1x128xf32>
    %c2 = arith.constant 2 : index
    %c0_10 = arith.constant 0 : index
    %8 = vector.load %arg3[%c2, %c0_10] : memref<3x128xf32, #tpu.memory_space<vmem>>, vector<1x128xf32>
    %c0_11 = arith.constant 0 : index
    %c0_12 = arith.constant 0 : index
    %9 = vector.load %arg1[%c0_11, %c0_12] : memref<8x32xf32, #tpu.memory_space<vmem>>, vector<2x32xf32>
    %c2_13 = arith.constant 2 : index
    %c0_14 = arith.constant 0 : index
    %10 = vector.load %arg1[%c2_13, %c0_14] : memref<8x32xf32, #tpu.memory_space<vmem>>, vector<2x32xf32>
    %c4 = arith.constant 4 : index
    %c0_15 = arith.constant 0 : index
    %11 = vector.load %arg1[%c4, %c0_15] : memref<8x32xf32, #tpu.memory_space<vmem>>, vector<2x32xf32>
    %c6 = arith.constant 6 : index
    %c0_16 = arith.constant 0 : index
    %12 = vector.load %arg1[%c6, %c0_16] : memref<8x32xf32, #tpu.memory_space<vmem>>, vector<2x32xf32>
    %13 = tpu.iota {dimensions = array<i32: 1>} : vector<16x64xi32>
    %14 = vector.broadcast %0 : vector<16x1xi32> to vector<16x64xi32>
    %15 = arith.cmpi eq, %13, %14 : vector<16x64xi32>
    %16 = arith.extui %15 : vector<16x64xi1> to vector<16x64xi32>
    %17 = arith.sitofp %16 : vector<16x64xi32> to vector<16x64xf32>
    %cst = arith.constant dense<0.000000e+00> : vector<16x128xf32>
    %18 = tpu.matmul %17, %2, %cst {dimension_numbers = #tpu.dot_dimension_numbers<[1], [0], [0], [1], [0, 0, 1, 1], [], []>} : vector<16x64xf32>, vector<64x128xf32>, vector<16x128xf32> -> vector<16x128xf32>
    %19 = vector.broadcast %6 : vector<1x128xf32> to vector<16x128xf32>
    %20 = arith.addf %18, %19 : vector<16x128xf32>
    %21 = vector.extract_strided_slice %20 {offsets = [0, 0], sizes = [2, 128], strides = [1, 1]} : vector<16x128xf32> to vector<2x128xf32>
    %cst_17 = arith.constant dense<0.000000e+00> : vector<2x128xf32>
    %22 = tpu.matmul %9, %3, %cst_17 {dimension_numbers = #tpu.dot_dimension_numbers<[1], [0], [0], [1], [0, 0, 1, 1], [], []>} : vector<2x32xf32>, vector<32x128xf32>, vector<2x128xf32> -> vector<2x128xf32>
    %23 = arith.addf %21, %22 : vector<2x128xf32>
    %24 = arith.negf %23 : vector<2x128xf32>
    %25 = math.exp %24 : vector<2x128xf32>
    %cst_18 = arith.constant 1.000000e+00 : f32
    %26 = vector.broadcast %cst_18 : f32 to vector<2x128xf32>
    %27 = arith.addf %26, %25 : vector<2x128xf32>
    %28 = arith.divf %26, %27 : vector<2x128xf32>
    %29 = vector.extract_strided_slice %23 {offsets = [0, 64], sizes = [2, 32], strides = [1, 1]} : vector<2x128xf32> to vector<2x32xf32>
    %30 = math.tanh %29 : vector<2x32xf32>
    %31 = vector.extract_strided_slice %28 {offsets = [0, 32], sizes = [2, 32], strides = [1, 1]} : vector<2x128xf32> to vector<2x32xf32>
    %32 = arith.mulf %31, %11 : vector<2x32xf32>
    %33 = vector.extract_strided_slice %28 {offsets = [0, 0], sizes = [2, 32], strides = [1, 1]} : vector<2x128xf32> to vector<2x32xf32>
    %34 = arith.mulf %33, %30 : vector<2x32xf32>
    %35 = arith.addf %32, %34 : vector<2x32xf32>
    %36 = vector.extract_strided_slice %28 {offsets = [0, 96], sizes = [2, 32], strides = [1, 1]} : vector<2x128xf32> to vector<2x32xf32>
    %37 = math.tanh %35 : vector<2x32xf32>
    %38 = arith.mulf %36, %37 : vector<2x32xf32>
    %c0_i32 = arith.constant 0 : i32
    %39 = vector.broadcast %c0_i32 : i32 to vector<2x1xi32>
    %40 = arith.cmpi sgt, %1, %39 : vector<2x1xi32>
    %41 = vector.shape_cast %40 : vector<2x1xi1> to vector<2x1xi1>
    %42 = vector.broadcast %41 : vector<2x1xi1> to vector<2x32xi1>
    %43 = arith.select %42, %38, %9 : vector<2x32xi1>, vector<2x32xf32>
    %44 = vector.shape_cast %40 : vector<2x1xi1> to vector<2x1xi1>
    %45 = vector.broadcast %44 : vector<2x1xi1> to vector<2x32xi1>
    %46 = arith.select %45, %35, %11 : vector<2x32xi1>, vector<2x32xf32>
    %47 = arith.extui %40 : vector<2x1xi1> to vector<2x1xi32>
    %48 = arith.sitofp %47 : vector<2x1xi32> to vector<2x1xf32>
    %49 = vector.broadcast %48 : vector<2x1xf32> to vector<2x32xf32>
    %50 = arith.mulf %49, %38 : vector<2x32xf32>
    %51 = vector.extract_strided_slice %20 {offsets = [2, 0], sizes = [2, 128], strides = [1, 1]} : vector<16x128xf32> to vector<2x128xf32>
    %cst_19 = arith.constant dense<0.000000e+00> : vector<2x128xf32>
    %52 = tpu.matmul %43, %3, %cst_19 {dimension_numbers = #tpu.dot_dimension_numbers<[1], [0], [0], [1], [0, 0, 1, 1], [], []>} : vector<2x32xf32>, vector<32x128xf32>, vector<2x128xf32> -> vector<2x128xf32>
    %53 = arith.addf %51, %52 : vector<2x128xf32>
    %54 = arith.negf %53 : vector<2x128xf32>
    %55 = math.exp %54 : vector<2x128xf32>
    %cst_20 = arith.constant 1.000000e+00 : f32
    %56 = vector.broadcast %cst_20 : f32 to vector<2x128xf32>
    %57 = arith.addf %56, %55 : vector<2x128xf32>
    %58 = arith.divf %56, %57 : vector<2x128xf32>
    %59 = vector.extract_strided_slice %53 {offsets = [0, 64], sizes = [2, 32], strides = [1, 1]} : vector<2x128xf32> to vector<2x32xf32>
    %60 = math.tanh %59 : vector<2x32xf32>
    %61 = vector.extract_strided_slice %58 {offsets = [0, 32], sizes = [2, 32], strides = [1, 1]} : vector<2x128xf32> to vector<2x32xf32>
    %62 = arith.mulf %61, %46 : vector<2x32xf32>
    %63 = vector.extract_strided_slice %58 {offsets = [0, 0], sizes = [2, 32], strides = [1, 1]} : vector<2x128xf32> to vector<2x32xf32>
    %64 = arith.mulf %63, %60 : vector<2x32xf32>
    %65 = arith.addf %62, %64 : vector<2x32xf32>
    %66 = vector.extract_strided_slice %58 {offsets = [0, 96], sizes = [2, 32], strides = [1, 1]} : vector<2x128xf32> to vector<2x32xf32>
    %67 = math.tanh %65 : vector<2x32xf32>
    %68 = arith.mulf %66, %67 : vector<2x32xf32>
    %c1_i32 = arith.constant 1 : i32
    %69 = vector.broadcast %c1_i32 : i32 to vector<2x1xi32>
    %70 = arith.cmpi sgt, %1, %69 : vector<2x1xi32>
    %71 = vector.shape_cast %70 : vector<2x1xi1> to vector<2x1xi1>
    %72 = vector.broadcast %71 : vector<2x1xi1> to vector<2x32xi1>
    %73 = arith.select %72, %68, %43 : vector<2x32xi1>, vector<2x32xf32>
    %74 = vector.shape_cast %70 : vector<2x1xi1> to vector<2x1xi1>
    %75 = vector.broadcast %74 : vector<2x1xi1> to vector<2x32xi1>
    %76 = arith.select %75, %65, %46 : vector<2x32xi1>, vector<2x32xf32>
    %77 = arith.extui %70 : vector<2x1xi1> to vector<2x1xi32>
    %78 = arith.sitofp %77 : vector<2x1xi32> to vector<2x1xf32>
    %79 = vector.broadcast %78 : vector<2x1xf32> to vector<2x32xf32>
    %80 = arith.mulf %79, %68 : vector<2x32xf32>
    %81 = vector.extract_strided_slice %20 {offsets = [4, 0], sizes = [2, 128], strides = [1, 1]} : vector<16x128xf32> to vector<2x128xf32>
    %cst_21 = arith.constant dense<0.000000e+00> : vector<2x128xf32>
    %82 = tpu.matmul %73, %3, %cst_21 {dimension_numbers = #tpu.dot_dimension_numbers<[1], [0], [0], [1], [0, 0, 1, 1], [], []>} : vector<2x32xf32>, vector<32x128xf32>, vector<2x128xf32> -> vector<2x128xf32>
    %83 = arith.addf %81, %82 : vector<2x128xf32>
    %84 = arith.negf %83 : vector<2x128xf32>
    %85 = math.exp %84 : vector<2x128xf32>
    %cst_22 = arith.constant 1.000000e+00 : f32
    %86 = vector.broadcast %cst_22 : f32 to vector<2x128xf32>
    %87 = arith.addf %86, %85 : vector<2x128xf32>
    %88 = arith.divf %86, %87 : vector<2x128xf32>
    %89 = vector.extract_strided_slice %83 {offsets = [0, 64], sizes = [2, 32], strides = [1, 1]} : vector<2x128xf32> to vector<2x32xf32>
    %90 = math.tanh %89 : vector<2x32xf32>
    %91 = vector.extract_strided_slice %88 {offsets = [0, 32], sizes = [2, 32], strides = [1, 1]} : vector<2x128xf32> to vector<2x32xf32>
    %92 = arith.mulf %91, %76 : vector<2x32xf32>
    %93 = vector.extract_strided_slice %88 {offsets = [0, 0], sizes = [2, 32], strides = [1, 1]} : vector<2x128xf32> to vector<2x32xf32>
    %94 = arith.mulf %93, %90 : vector<2x32xf32>
    %95 = arith.addf %92, %94 : vector<2x32xf32>
    %96 = vector.extract_strided_slice %88 {offsets = [0, 96], sizes = [2, 32], strides = [1, 1]} : vector<2x128xf32> to vector<2x32xf32>
    %97 = math.tanh %95 : vector<2x32xf32>
    %98 = arith.mulf %96, %97 : vector<2x32xf32>
    %c2_i32 = arith.constant 2 : i32
    %99 = vector.broadcast %c2_i32 : i32 to vector<2x1xi32>
    %100 = arith.cmpi sgt, %1, %99 : vector<2x1xi32>
    %101 = vector.shape_cast %100 : vector<2x1xi1> to vector<2x1xi1>
    %102 = vector.broadcast %101 : vector<2x1xi1> to vector<2x32xi1>
    %103 = arith.select %102, %98, %73 : vector<2x32xi1>, vector<2x32xf32>
    %104 = vector.shape_cast %100 : vector<2x1xi1> to vector<2x1xi1>
    %105 = vector.broadcast %104 : vector<2x1xi1> to vector<2x32xi1>
    %106 = arith.select %105, %95, %76 : vector<2x32xi1>, vector<2x32xf32>
    %107 = arith.extui %100 : vector<2x1xi1> to vector<2x1xi32>
    %108 = arith.sitofp %107 : vector<2x1xi32> to vector<2x1xf32>
    %109 = vector.broadcast %108 : vector<2x1xf32> to vector<2x32xf32>
    %110 = arith.mulf %109, %98 : vector<2x32xf32>
    %111 = vector.extract_strided_slice %20 {offsets = [6, 0], sizes = [2, 128], strides = [1, 1]} : vector<16x128xf32> to vector<2x128xf32>
    %cst_23 = arith.constant dense<0.000000e+00> : vector<2x128xf32>
    %112 = tpu.matmul %103, %3, %cst_23 {dimension_numbers = #tpu.dot_dimension_numbers<[1], [0], [0], [1], [0, 0, 1, 1], [], []>} : vector<2x32xf32>, vector<32x128xf32>, vector<2x128xf32> -> vector<2x128xf32>
    %113 = arith.addf %111, %112 : vector<2x128xf32>
    %114 = arith.negf %113 : vector<2x128xf32>
    %115 = math.exp %114 : vector<2x128xf32>
    %cst_24 = arith.constant 1.000000e+00 : f32
    %116 = vector.broadcast %cst_24 : f32 to vector<2x128xf32>
    %117 = arith.addf %116, %115 : vector<2x128xf32>
    %118 = arith.divf %116, %117 : vector<2x128xf32>
    %119 = vector.extract_strided_slice %113 {offsets = [0, 64], sizes = [2, 32], strides = [1, 1]} : vector<2x128xf32> to vector<2x32xf32>
    %120 = math.tanh %119 : vector<2x32xf32>
    %121 = vector.extract_strided_slice %118 {offsets = [0, 32], sizes = [2, 32], strides = [1, 1]} : vector<2x128xf32> to vector<2x32xf32>
    %122 = arith.mulf %121, %106 : vector<2x32xf32>
    %123 = vector.extract_strided_slice %118 {offsets = [0, 0], sizes = [2, 32], strides = [1, 1]} : vector<2x128xf32> to vector<2x32xf32>
    %124 = arith.mulf %123, %120 : vector<2x32xf32>
    %125 = arith.addf %122, %124 : vector<2x32xf32>
    %126 = vector.extract_strided_slice %118 {offsets = [0, 96], sizes = [2, 32], strides = [1, 1]} : vector<2x128xf32> to vector<2x32xf32>
    %127 = math.tanh %125 : vector<2x32xf32>
    %128 = arith.mulf %126, %127 : vector<2x32xf32>
    %c3_i32 = arith.constant 3 : i32
    %129 = vector.broadcast %c3_i32 : i32 to vector<2x1xi32>
    %130 = arith.cmpi sgt, %1, %129 : vector<2x1xi32>
    %131 = vector.shape_cast %130 : vector<2x1xi1> to vector<2x1xi1>
    %132 = vector.broadcast %131 : vector<2x1xi1> to vector<2x32xi1>
    %133 = arith.select %132, %128, %103 : vector<2x32xi1>, vector<2x32xf32>
    %134 = vector.shape_cast %130 : vector<2x1xi1> to vector<2x1xi1>
    %135 = vector.broadcast %134 : vector<2x1xi1> to vector<2x32xi1>
    %136 = arith.select %135, %125, %106 : vector<2x32xi1>, vector<2x32xf32>
    %137 = arith.extui %130 : vector<2x1xi1> to vector<2x1xi32>
    %138 = arith.sitofp %137 : vector<2x1xi32> to vector<2x1xf32>
    %139 = vector.broadcast %138 : vector<2x1xf32> to vector<2x32xf32>
    %140 = arith.mulf %139, %128 : vector<2x32xf32>
    %141 = vector.extract_strided_slice %20 {offsets = [8, 0], sizes = [2, 128], strides = [1, 1]} : vector<16x128xf32> to vector<2x128xf32>
    %cst_25 = arith.constant dense<0.000000e+00> : vector<2x128xf32>
    %142 = tpu.matmul %133, %3, %cst_25 {dimension_numbers = #tpu.dot_dimension_numbers<[1], [0], [0], [1], [0, 0, 1, 1], [], []>} : vector<2x32xf32>, vector<32x128xf32>, vector<2x128xf32> -> vector<2x128xf32>
    %143 = arith.addf %141, %142 : vector<2x128xf32>
    %144 = arith.negf %143 : vector<2x128xf32>
    %145 = math.exp %144 : vector<2x128xf32>
    %cst_26 = arith.constant 1.000000e+00 : f32
    %146 = vector.broadcast %cst_26 : f32 to vector<2x128xf32>
    %147 = arith.addf %146, %145 : vector<2x128xf32>
    %148 = arith.divf %146, %147 : vector<2x128xf32>
    %149 = vector.extract_strided_slice %143 {offsets = [0, 64], sizes = [2, 32], strides = [1, 1]} : vector<2x128xf32> to vector<2x32xf32>
    %150 = math.tanh %149 : vector<2x32xf32>
    %151 = vector.extract_strided_slice %148 {offsets = [0, 32], sizes = [2, 32], strides = [1, 1]} : vector<2x128xf32> to vector<2x32xf32>
    %152 = arith.mulf %151, %136 : vector<2x32xf32>
    %153 = vector.extract_strided_slice %148 {offsets = [0, 0], sizes = [2, 32], strides = [1, 1]} : vector<2x128xf32> to vector<2x32xf32>
    %154 = arith.mulf %153, %150 : vector<2x32xf32>
    %155 = arith.addf %152, %154 : vector<2x32xf32>
    %156 = vector.extract_strided_slice %148 {offsets = [0, 96], sizes = [2, 32], strides = [1, 1]} : vector<2x128xf32> to vector<2x32xf32>
    %157 = math.tanh %155 : vector<2x32xf32>
    %158 = arith.mulf %156, %157 : vector<2x32xf32>
    %c4_i32 = arith.constant 4 : i32
    %159 = vector.broadcast %c4_i32 : i32 to vector<2x1xi32>
    %160 = arith.cmpi sgt, %1, %159 : vector<2x1xi32>
    %161 = vector.shape_cast %160 : vector<2x1xi1> to vector<2x1xi1>
    %162 = vector.broadcast %161 : vector<2x1xi1> to vector<2x32xi1>
    %163 = arith.select %162, %158, %133 : vector<2x32xi1>, vector<2x32xf32>
    %164 = vector.shape_cast %160 : vector<2x1xi1> to vector<2x1xi1>
    %165 = vector.broadcast %164 : vector<2x1xi1> to vector<2x32xi1>
    %166 = arith.select %165, %155, %136 : vector<2x32xi1>, vector<2x32xf32>
    %167 = arith.extui %160 : vector<2x1xi1> to vector<2x1xi32>
    %168 = arith.sitofp %167 : vector<2x1xi32> to vector<2x1xf32>
    %169 = vector.broadcast %168 : vector<2x1xf32> to vector<2x32xf32>
    %170 = arith.mulf %169, %158 : vector<2x32xf32>
    %171 = vector.extract_strided_slice %20 {offsets = [10, 0], sizes = [2, 128], strides = [1, 1]} : vector<16x128xf32> to vector<2x128xf32>
    %cst_27 = arith.constant dense<0.000000e+00> : vector<2x128xf32>
    %172 = tpu.matmul %163, %3, %cst_27 {dimension_numbers = #tpu.dot_dimension_numbers<[1], [0], [0], [1], [0, 0, 1, 1], [], []>} : vector<2x32xf32>, vector<32x128xf32>, vector<2x128xf32> -> vector<2x128xf32>
    %173 = arith.addf %171, %172 : vector<2x128xf32>
    %174 = arith.negf %173 : vector<2x128xf32>
    %175 = math.exp %174 : vector<2x128xf32>
    %cst_28 = arith.constant 1.000000e+00 : f32
    %176 = vector.broadcast %cst_28 : f32 to vector<2x128xf32>
    %177 = arith.addf %176, %175 : vector<2x128xf32>
    %178 = arith.divf %176, %177 : vector<2x128xf32>
    %179 = vector.extract_strided_slice %173 {offsets = [0, 64], sizes = [2, 32], strides = [1, 1]} : vector<2x128xf32> to vector<2x32xf32>
    %180 = math.tanh %179 : vector<2x32xf32>
    %181 = vector.extract_strided_slice %178 {offsets = [0, 32], sizes = [2, 32], strides = [1, 1]} : vector<2x128xf32> to vector<2x32xf32>
    %182 = arith.mulf %181, %166 : vector<2x32xf32>
    %183 = vector.extract_strided_slice %178 {offsets = [0, 0], sizes = [2, 32], strides = [1, 1]} : vector<2x128xf32> to vector<2x32xf32>
    %184 = arith.mulf %183, %180 : vector<2x32xf32>
    %185 = arith.addf %182, %184 : vector<2x32xf32>
    %186 = vector.extract_strided_slice %178 {offsets = [0, 96], sizes = [2, 32], strides = [1, 1]} : vector<2x128xf32> to vector<2x32xf32>
    %187 = math.tanh %185 : vector<2x32xf32>
    %188 = arith.mulf %186, %187 : vector<2x32xf32>
    %c5_i32 = arith.constant 5 : i32
    %189 = vector.broadcast %c5_i32 : i32 to vector<2x1xi32>
    %190 = arith.cmpi sgt, %1, %189 : vector<2x1xi32>
    %191 = vector.shape_cast %190 : vector<2x1xi1> to vector<2x1xi1>
    %192 = vector.broadcast %191 : vector<2x1xi1> to vector<2x32xi1>
    %193 = arith.select %192, %188, %163 : vector<2x32xi1>, vector<2x32xf32>
    %194 = vector.shape_cast %190 : vector<2x1xi1> to vector<2x1xi1>
    %195 = vector.broadcast %194 : vector<2x1xi1> to vector<2x32xi1>
    %196 = arith.select %195, %185, %166 : vector<2x32xi1>, vector<2x32xf32>
    %197 = arith.extui %190 : vector<2x1xi1> to vector<2x1xi32>
    %198 = arith.sitofp %197 : vector<2x1xi32> to vector<2x1xf32>
    %199 = vector.broadcast %198 : vector<2x1xf32> to vector<2x32xf32>
    %200 = arith.mulf %199, %188 : vector<2x32xf32>
    %201 = vector.extract_strided_slice %20 {offsets = [12, 0], sizes = [2, 128], strides = [1, 1]} : vector<16x128xf32> to vector<2x128xf32>
    %cst_29 = arith.constant dense<0.000000e+00> : vector<2x128xf32>
    %202 = tpu.matmul %193, %3, %cst_29 {dimension_numbers = #tpu.dot_dimension_numbers<[1], [0], [0], [1], [0, 0, 1, 1], [], []>} : vector<2x32xf32>, vector<32x128xf32>, vector<2x128xf32> -> vector<2x128xf32>
    %203 = arith.addf %201, %202 : vector<2x128xf32>
    %204 = arith.negf %203 : vector<2x128xf32>
    %205 = math.exp %204 : vector<2x128xf32>
    %cst_30 = arith.constant 1.000000e+00 : f32
    %206 = vector.broadcast %cst_30 : f32 to vector<2x128xf32>
    %207 = arith.addf %206, %205 : vector<2x128xf32>
    %208 = arith.divf %206, %207 : vector<2x128xf32>
    %209 = vector.extract_strided_slice %203 {offsets = [0, 64], sizes = [2, 32], strides = [1, 1]} : vector<2x128xf32> to vector<2x32xf32>
    %210 = math.tanh %209 : vector<2x32xf32>
    %211 = vector.extract_strided_slice %208 {offsets = [0, 32], sizes = [2, 32], strides = [1, 1]} : vector<2x128xf32> to vector<2x32xf32>
    %212 = arith.mulf %211, %196 : vector<2x32xf32>
    %213 = vector.extract_strided_slice %208 {offsets = [0, 0], sizes = [2, 32], strides = [1, 1]} : vector<2x128xf32> to vector<2x32xf32>
    %214 = arith.mulf %213, %210 : vector<2x32xf32>
    %215 = arith.addf %212, %214 : vector<2x32xf32>
    %216 = vector.extract_strided_slice %208 {offsets = [0, 96], sizes = [2, 32], strides = [1, 1]} : vector<2x128xf32> to vector<2x32xf32>
    %217 = math.tanh %215 : vector<2x32xf32>
    %218 = arith.mulf %216, %217 : vector<2x32xf32>
    %c6_i32 = arith.constant 6 : i32
    %219 = vector.broadcast %c6_i32 : i32 to vector<2x1xi32>
    %220 = arith.cmpi sgt, %1, %219 : vector<2x1xi32>
    %221 = vector.shape_cast %220 : vector<2x1xi1> to vector<2x1xi1>
    %222 = vector.broadcast %221 : vector<2x1xi1> to vector<2x32xi1>
    %223 = arith.select %222, %218, %193 : vector<2x32xi1>, vector<2x32xf32>
    %224 = vector.shape_cast %220 : vector<2x1xi1> to vector<2x1xi1>
    %225 = vector.broadcast %224 : vector<2x1xi1> to vector<2x32xi1>
    %226 = arith.select %225, %215, %196 : vector<2x32xi1>, vector<2x32xf32>
    %227 = arith.extui %220 : vector<2x1xi1> to vector<2x1xi32>
    %228 = arith.sitofp %227 : vector<2x1xi32> to vector<2x1xf32>
    %229 = vector.broadcast %228 : vector<2x1xf32> to vector<2x32xf32>
    %230 = arith.mulf %229, %218 : vector<2x32xf32>
    %231 = vector.extract_strided_slice %20 {offsets = [14, 0], sizes = [2, 128], strides = [1, 1]} : vector<16x128xf32> to vector<2x128xf32>
    %cst_31 = arith.constant dense<0.000000e+00> : vector<2x128xf32>
    %232 = tpu.matmul %223, %3, %cst_31 {dimension_numbers = #tpu.dot_dimension_numbers<[1], [0], [0], [1], [0, 0, 1, 1], [], []>} : vector<2x32xf32>, vector<32x128xf32>, vector<2x128xf32> -> vector<2x128xf32>
    %233 = arith.addf %231, %232 : vector<2x128xf32>
    %234 = arith.negf %233 : vector<2x128xf32>
    %235 = math.exp %234 : vector<2x128xf32>
    %cst_32 = arith.constant 1.000000e+00 : f32
    %236 = vector.broadcast %cst_32 : f32 to vector<2x128xf32>
    %237 = arith.addf %236, %235 : vector<2x128xf32>
    %238 = arith.divf %236, %237 : vector<2x128xf32>
    %239 = vector.extract_strided_slice %233 {offsets = [0, 64], sizes = [2, 32], strides = [1, 1]} : vector<2x128xf32> to vector<2x32xf32>
    %240 = math.tanh %239 : vector<2x32xf32>
    %241 = vector.extract_strided_slice %238 {offsets = [0, 32], sizes = [2, 32], strides = [1, 1]} : vector<2x128xf32> to vector<2x32xf32>
    %242 = arith.mulf %241, %226 : vector<2x32xf32>
    %243 = vector.extract_strided_slice %238 {offsets = [0, 0], sizes = [2, 32], strides = [1, 1]} : vector<2x128xf32> to vector<2x32xf32>
    %244 = arith.mulf %243, %240 : vector<2x32xf32>
    %245 = arith.addf %242, %244 : vector<2x32xf32>
    %246 = vector.extract_strided_slice %238 {offsets = [0, 96], sizes = [2, 32], strides = [1, 1]} : vector<2x128xf32> to vector<2x32xf32>
    %247 = math.tanh %245 : vector<2x32xf32>
    %248 = arith.mulf %246, %247 : vector<2x32xf32>
    %c7_i32 = arith.constant 7 : i32
    %249 = vector.broadcast %c7_i32 : i32 to vector<2x1xi32>
    %250 = arith.cmpi sgt, %1, %249 : vector<2x1xi32>
    %251 = vector.shape_cast %250 : vector<2x1xi1> to vector<2x1xi1>
    %252 = vector.broadcast %251 : vector<2x1xi1> to vector<2x32xi1>
    %253 = arith.select %252, %248, %223 : vector<2x32xi1>, vector<2x32xf32>
    %254 = vector.shape_cast %250 : vector<2x1xi1> to vector<2x1xi1>
    %255 = vector.broadcast %254 : vector<2x1xi1> to vector<2x32xi1>
    %256 = arith.select %255, %245, %226 : vector<2x32xi1>, vector<2x32xf32>
    %257 = arith.extui %250 : vector<2x1xi1> to vector<2x1xi32>
    %258 = arith.sitofp %257 : vector<2x1xi32> to vector<2x1xf32>
    %259 = vector.broadcast %258 : vector<2x1xf32> to vector<2x32xf32>
    %260 = arith.mulf %259, %248 : vector<2x32xf32>
    %261 = tpu.concatenate %50, %10 in 1 : vector<2x32xf32>, vector<2x32xf32> -> vector<2x64xf32>
    %cst_33 = arith.constant dense<0.000000e+00> : vector<2x128xf32>
    %262 = tpu.matmul %261, %4, %cst_33 {dimension_numbers = #tpu.dot_dimension_numbers<[1], [0], [0], [1], [0, 0, 1, 1], [], []>} : vector<2x64xf32>, vector<64x128xf32>, vector<2x128xf32> -> vector<2x128xf32>
    %263 = vector.broadcast %7 : vector<1x128xf32> to vector<2x128xf32>
    %264 = arith.addf %262, %263 : vector<2x128xf32>
    %265 = arith.negf %264 : vector<2x128xf32>
    %266 = math.exp %265 : vector<2x128xf32>
    %cst_34 = arith.constant 1.000000e+00 : f32
    %267 = vector.broadcast %cst_34 : f32 to vector<2x128xf32>
    %268 = arith.addf %267, %266 : vector<2x128xf32>
    %269 = arith.divf %267, %268 : vector<2x128xf32>
    %270 = vector.extract_strided_slice %264 {offsets = [0, 64], sizes = [2, 32], strides = [1, 1]} : vector<2x128xf32> to vector<2x32xf32>
    %271 = math.tanh %270 : vector<2x32xf32>
    %272 = vector.extract_strided_slice %269 {offsets = [0, 32], sizes = [2, 32], strides = [1, 1]} : vector<2x128xf32> to vector<2x32xf32>
    %273 = arith.mulf %272, %12 : vector<2x32xf32>
    %274 = vector.extract_strided_slice %269 {offsets = [0, 0], sizes = [2, 32], strides = [1, 1]} : vector<2x128xf32> to vector<2x32xf32>
    %275 = arith.mulf %274, %271 : vector<2x32xf32>
    %276 = arith.addf %273, %275 : vector<2x32xf32>
    %277 = vector.extract_strided_slice %269 {offsets = [0, 96], sizes = [2, 32], strides = [1, 1]} : vector<2x128xf32> to vector<2x32xf32>
    %278 = math.tanh %276 : vector<2x32xf32>
    %279 = arith.mulf %277, %278 : vector<2x32xf32>
    %c0_i32_35 = arith.constant 0 : i32
    %280 = vector.broadcast %c0_i32_35 : i32 to vector<2x1xi32>
    %281 = arith.cmpi sgt, %1, %280 : vector<2x1xi32>
    %282 = vector.shape_cast %281 : vector<2x1xi1> to vector<2x1xi1>
    %283 = vector.broadcast %282 : vector<2x1xi1> to vector<2x32xi1>
    %284 = arith.select %283, %279, %10 : vector<2x32xi1>, vector<2x32xf32>
    %285 = vector.shape_cast %281 : vector<2x1xi1> to vector<2x1xi1>
    %286 = vector.broadcast %285 : vector<2x1xi1> to vector<2x32xi1>
    %287 = arith.select %286, %276, %12 : vector<2x32xi1>, vector<2x32xf32>
    %288 = arith.extui %281 : vector<2x1xi1> to vector<2x1xi32>
    %289 = arith.sitofp %288 : vector<2x1xi32> to vector<2x1xf32>
    %290 = vector.broadcast %289 : vector<2x1xf32> to vector<2x32xf32>
    %291 = arith.mulf %290, %279 : vector<2x32xf32>
    %292 = tpu.concatenate %80, %284 in 1 : vector<2x32xf32>, vector<2x32xf32> -> vector<2x64xf32>
    %cst_36 = arith.constant dense<0.000000e+00> : vector<2x128xf32>
    %293 = tpu.matmul %292, %4, %cst_36 {dimension_numbers = #tpu.dot_dimension_numbers<[1], [0], [0], [1], [0, 0, 1, 1], [], []>} : vector<2x64xf32>, vector<64x128xf32>, vector<2x128xf32> -> vector<2x128xf32>
    %294 = vector.broadcast %7 : vector<1x128xf32> to vector<2x128xf32>
    %295 = arith.addf %293, %294 : vector<2x128xf32>
    %296 = arith.negf %295 : vector<2x128xf32>
    %297 = math.exp %296 : vector<2x128xf32>
    %cst_37 = arith.constant 1.000000e+00 : f32
    %298 = vector.broadcast %cst_37 : f32 to vector<2x128xf32>
    %299 = arith.addf %298, %297 : vector<2x128xf32>
    %300 = arith.divf %298, %299 : vector<2x128xf32>
    %301 = vector.extract_strided_slice %295 {offsets = [0, 64], sizes = [2, 32], strides = [1, 1]} : vector<2x128xf32> to vector<2x32xf32>
    %302 = math.tanh %301 : vector<2x32xf32>
    %303 = vector.extract_strided_slice %300 {offsets = [0, 32], sizes = [2, 32], strides = [1, 1]} : vector<2x128xf32> to vector<2x32xf32>
    %304 = arith.mulf %303, %287 : vector<2x32xf32>
    %305 = vector.extract_strided_slice %300 {offsets = [0, 0], sizes = [2, 32], strides = [1, 1]} : vector<2x128xf32> to vector<2x32xf32>
    %306 = arith.mulf %305, %302 : vector<2x32xf32>
    %307 = arith.addf %304, %306 : vector<2x32xf32>
    %308 = vector.extract_strided_slice %300 {offsets = [0, 96], sizes = [2, 32], strides = [1, 1]} : vector<2x128xf32> to vector<2x32xf32>
    %309 = math.tanh %307 : vector<2x32xf32>
    %310 = arith.mulf %308, %309 : vector<2x32xf32>
    %c1_i32_38 = arith.constant 1 : i32
    %311 = vector.broadcast %c1_i32_38 : i32 to vector<2x1xi32>
    %312 = arith.cmpi sgt, %1, %311 : vector<2x1xi32>
    %313 = vector.shape_cast %312 : vector<2x1xi1> to vector<2x1xi1>
    %314 = vector.broadcast %313 : vector<2x1xi1> to vector<2x32xi1>
    %315 = arith.select %314, %310, %284 : vector<2x32xi1>, vector<2x32xf32>
    %316 = vector.shape_cast %312 : vector<2x1xi1> to vector<2x1xi1>
    %317 = vector.broadcast %316 : vector<2x1xi1> to vector<2x32xi1>
    %318 = arith.select %317, %307, %287 : vector<2x32xi1>, vector<2x32xf32>
    %319 = arith.extui %312 : vector<2x1xi1> to vector<2x1xi32>
    %320 = arith.sitofp %319 : vector<2x1xi32> to vector<2x1xf32>
    %321 = vector.broadcast %320 : vector<2x1xf32> to vector<2x32xf32>
    %322 = arith.mulf %321, %310 : vector<2x32xf32>
    %323 = tpu.concatenate %110, %315 in 1 : vector<2x32xf32>, vector<2x32xf32> -> vector<2x64xf32>
    %cst_39 = arith.constant dense<0.000000e+00> : vector<2x128xf32>
    %324 = tpu.matmul %323, %4, %cst_39 {dimension_numbers = #tpu.dot_dimension_numbers<[1], [0], [0], [1], [0, 0, 1, 1], [], []>} : vector<2x64xf32>, vector<64x128xf32>, vector<2x128xf32> -> vector<2x128xf32>
    %325 = vector.broadcast %7 : vector<1x128xf32> to vector<2x128xf32>
    %326 = arith.addf %324, %325 : vector<2x128xf32>
    %327 = arith.negf %326 : vector<2x128xf32>
    %328 = math.exp %327 : vector<2x128xf32>
    %cst_40 = arith.constant 1.000000e+00 : f32
    %329 = vector.broadcast %cst_40 : f32 to vector<2x128xf32>
    %330 = arith.addf %329, %328 : vector<2x128xf32>
    %331 = arith.divf %329, %330 : vector<2x128xf32>
    %332 = vector.extract_strided_slice %326 {offsets = [0, 64], sizes = [2, 32], strides = [1, 1]} : vector<2x128xf32> to vector<2x32xf32>
    %333 = math.tanh %332 : vector<2x32xf32>
    %334 = vector.extract_strided_slice %331 {offsets = [0, 32], sizes = [2, 32], strides = [1, 1]} : vector<2x128xf32> to vector<2x32xf32>
    %335 = arith.mulf %334, %318 : vector<2x32xf32>
    %336 = vector.extract_strided_slice %331 {offsets = [0, 0], sizes = [2, 32], strides = [1, 1]} : vector<2x128xf32> to vector<2x32xf32>
    %337 = arith.mulf %336, %333 : vector<2x32xf32>
    %338 = arith.addf %335, %337 : vector<2x32xf32>
    %339 = vector.extract_strided_slice %331 {offsets = [0, 96], sizes = [2, 32], strides = [1, 1]} : vector<2x128xf32> to vector<2x32xf32>
    %340 = math.tanh %338 : vector<2x32xf32>
    %341 = arith.mulf %339, %340 : vector<2x32xf32>
    %c2_i32_41 = arith.constant 2 : i32
    %342 = vector.broadcast %c2_i32_41 : i32 to vector<2x1xi32>
    %343 = arith.cmpi sgt, %1, %342 : vector<2x1xi32>
    %344 = vector.shape_cast %343 : vector<2x1xi1> to vector<2x1xi1>
    %345 = vector.broadcast %344 : vector<2x1xi1> to vector<2x32xi1>
    %346 = arith.select %345, %341, %315 : vector<2x32xi1>, vector<2x32xf32>
    %347 = vector.shape_cast %343 : vector<2x1xi1> to vector<2x1xi1>
    %348 = vector.broadcast %347 : vector<2x1xi1> to vector<2x32xi1>
    %349 = arith.select %348, %338, %318 : vector<2x32xi1>, vector<2x32xf32>
    %350 = arith.extui %343 : vector<2x1xi1> to vector<2x1xi32>
    %351 = arith.sitofp %350 : vector<2x1xi32> to vector<2x1xf32>
    %352 = vector.broadcast %351 : vector<2x1xf32> to vector<2x32xf32>
    %353 = arith.mulf %352, %341 : vector<2x32xf32>
    %354 = tpu.concatenate %140, %346 in 1 : vector<2x32xf32>, vector<2x32xf32> -> vector<2x64xf32>
    %cst_42 = arith.constant dense<0.000000e+00> : vector<2x128xf32>
    %355 = tpu.matmul %354, %4, %cst_42 {dimension_numbers = #tpu.dot_dimension_numbers<[1], [0], [0], [1], [0, 0, 1, 1], [], []>} : vector<2x64xf32>, vector<64x128xf32>, vector<2x128xf32> -> vector<2x128xf32>
    %356 = vector.broadcast %7 : vector<1x128xf32> to vector<2x128xf32>
    %357 = arith.addf %355, %356 : vector<2x128xf32>
    %358 = arith.negf %357 : vector<2x128xf32>
    %359 = math.exp %358 : vector<2x128xf32>
    %cst_43 = arith.constant 1.000000e+00 : f32
    %360 = vector.broadcast %cst_43 : f32 to vector<2x128xf32>
    %361 = arith.addf %360, %359 : vector<2x128xf32>
    %362 = arith.divf %360, %361 : vector<2x128xf32>
    %363 = vector.extract_strided_slice %357 {offsets = [0, 64], sizes = [2, 32], strides = [1, 1]} : vector<2x128xf32> to vector<2x32xf32>
    %364 = math.tanh %363 : vector<2x32xf32>
    %365 = vector.extract_strided_slice %362 {offsets = [0, 32], sizes = [2, 32], strides = [1, 1]} : vector<2x128xf32> to vector<2x32xf32>
    %366 = arith.mulf %365, %349 : vector<2x32xf32>
    %367 = vector.extract_strided_slice %362 {offsets = [0, 0], sizes = [2, 32], strides = [1, 1]} : vector<2x128xf32> to vector<2x32xf32>
    %368 = arith.mulf %367, %364 : vector<2x32xf32>
    %369 = arith.addf %366, %368 : vector<2x32xf32>
    %370 = vector.extract_strided_slice %362 {offsets = [0, 96], sizes = [2, 32], strides = [1, 1]} : vector<2x128xf32> to vector<2x32xf32>
    %371 = math.tanh %369 : vector<2x32xf32>
    %372 = arith.mulf %370, %371 : vector<2x32xf32>
    %c3_i32_44 = arith.constant 3 : i32
    %373 = vector.broadcast %c3_i32_44 : i32 to vector<2x1xi32>
    %374 = arith.cmpi sgt, %1, %373 : vector<2x1xi32>
    %375 = vector.shape_cast %374 : vector<2x1xi1> to vector<2x1xi1>
    %376 = vector.broadcast %375 : vector<2x1xi1> to vector<2x32xi1>
    %377 = arith.select %376, %372, %346 : vector<2x32xi1>, vector<2x32xf32>
    %378 = vector.shape_cast %374 : vector<2x1xi1> to vector<2x1xi1>
    %379 = vector.broadcast %378 : vector<2x1xi1> to vector<2x32xi1>
    %380 = arith.select %379, %369, %349 : vector<2x32xi1>, vector<2x32xf32>
    %381 = arith.extui %374 : vector<2x1xi1> to vector<2x1xi32>
    %382 = arith.sitofp %381 : vector<2x1xi32> to vector<2x1xf32>
    %383 = vector.broadcast %382 : vector<2x1xf32> to vector<2x32xf32>
    %384 = arith.mulf %383, %372 : vector<2x32xf32>
    %385 = tpu.concatenate %170, %377 in 1 : vector<2x32xf32>, vector<2x32xf32> -> vector<2x64xf32>
    %cst_45 = arith.constant dense<0.000000e+00> : vector<2x128xf32>
    %386 = tpu.matmul %385, %4, %cst_45 {dimension_numbers = #tpu.dot_dimension_numbers<[1], [0], [0], [1], [0, 0, 1, 1], [], []>} : vector<2x64xf32>, vector<64x128xf32>, vector<2x128xf32> -> vector<2x128xf32>
    %387 = vector.broadcast %7 : vector<1x128xf32> to vector<2x128xf32>
    %388 = arith.addf %386, %387 : vector<2x128xf32>
    %389 = arith.negf %388 : vector<2x128xf32>
    %390 = math.exp %389 : vector<2x128xf32>
    %cst_46 = arith.constant 1.000000e+00 : f32
    %391 = vector.broadcast %cst_46 : f32 to vector<2x128xf32>
    %392 = arith.addf %391, %390 : vector<2x128xf32>
    %393 = arith.divf %391, %392 : vector<2x128xf32>
    %394 = vector.extract_strided_slice %388 {offsets = [0, 64], sizes = [2, 32], strides = [1, 1]} : vector<2x128xf32> to vector<2x32xf32>
    %395 = math.tanh %394 : vector<2x32xf32>
    %396 = vector.extract_strided_slice %393 {offsets = [0, 32], sizes = [2, 32], strides = [1, 1]} : vector<2x128xf32> to vector<2x32xf32>
    %397 = arith.mulf %396, %380 : vector<2x32xf32>
    %398 = vector.extract_strided_slice %393 {offsets = [0, 0], sizes = [2, 32], strides = [1, 1]} : vector<2x128xf32> to vector<2x32xf32>
    %399 = arith.mulf %398, %395 : vector<2x32xf32>
    %400 = arith.addf %397, %399 : vector<2x32xf32>
    %401 = vector.extract_strided_slice %393 {offsets = [0, 96], sizes = [2, 32], strides = [1, 1]} : vector<2x128xf32> to vector<2x32xf32>
    %402 = math.tanh %400 : vector<2x32xf32>
    %403 = arith.mulf %401, %402 : vector<2x32xf32>
    %c4_i32_47 = arith.constant 4 : i32
    %404 = vector.broadcast %c4_i32_47 : i32 to vector<2x1xi32>
    %405 = arith.cmpi sgt, %1, %404 : vector<2x1xi32>
    %406 = vector.shape_cast %405 : vector<2x1xi1> to vector<2x1xi1>
    %407 = vector.broadcast %406 : vector<2x1xi1> to vector<2x32xi1>
    %408 = arith.select %407, %403, %377 : vector<2x32xi1>, vector<2x32xf32>
    %409 = vector.shape_cast %405 : vector<2x1xi1> to vector<2x1xi1>
    %410 = vector.broadcast %409 : vector<2x1xi1> to vector<2x32xi1>
    %411 = arith.select %410, %400, %380 : vector<2x32xi1>, vector<2x32xf32>
    %412 = arith.extui %405 : vector<2x1xi1> to vector<2x1xi32>
    %413 = arith.sitofp %412 : vector<2x1xi32> to vector<2x1xf32>
    %414 = vector.broadcast %413 : vector<2x1xf32> to vector<2x32xf32>
    %415 = arith.mulf %414, %403 : vector<2x32xf32>
    %416 = tpu.concatenate %200, %408 in 1 : vector<2x32xf32>, vector<2x32xf32> -> vector<2x64xf32>
    %cst_48 = arith.constant dense<0.000000e+00> : vector<2x128xf32>
    %417 = tpu.matmul %416, %4, %cst_48 {dimension_numbers = #tpu.dot_dimension_numbers<[1], [0], [0], [1], [0, 0, 1, 1], [], []>} : vector<2x64xf32>, vector<64x128xf32>, vector<2x128xf32> -> vector<2x128xf32>
    %418 = vector.broadcast %7 : vector<1x128xf32> to vector<2x128xf32>
    %419 = arith.addf %417, %418 : vector<2x128xf32>
    %420 = arith.negf %419 : vector<2x128xf32>
    %421 = math.exp %420 : vector<2x128xf32>
    %cst_49 = arith.constant 1.000000e+00 : f32
    %422 = vector.broadcast %cst_49 : f32 to vector<2x128xf32>
    %423 = arith.addf %422, %421 : vector<2x128xf32>
    %424 = arith.divf %422, %423 : vector<2x128xf32>
    %425 = vector.extract_strided_slice %419 {offsets = [0, 64], sizes = [2, 32], strides = [1, 1]} : vector<2x128xf32> to vector<2x32xf32>
    %426 = math.tanh %425 : vector<2x32xf32>
    %427 = vector.extract_strided_slice %424 {offsets = [0, 32], sizes = [2, 32], strides = [1, 1]} : vector<2x128xf32> to vector<2x32xf32>
    %428 = arith.mulf %427, %411 : vector<2x32xf32>
    %429 = vector.extract_strided_slice %424 {offsets = [0, 0], sizes = [2, 32], strides = [1, 1]} : vector<2x128xf32> to vector<2x32xf32>
    %430 = arith.mulf %429, %426 : vector<2x32xf32>
    %431 = arith.addf %428, %430 : vector<2x32xf32>
    %432 = vector.extract_strided_slice %424 {offsets = [0, 96], sizes = [2, 32], strides = [1, 1]} : vector<2x128xf32> to vector<2x32xf32>
    %433 = math.tanh %431 : vector<2x32xf32>
    %434 = arith.mulf %432, %433 : vector<2x32xf32>
    %c5_i32_50 = arith.constant 5 : i32
    %435 = vector.broadcast %c5_i32_50 : i32 to vector<2x1xi32>
    %436 = arith.cmpi sgt, %1, %435 : vector<2x1xi32>
    %437 = vector.shape_cast %436 : vector<2x1xi1> to vector<2x1xi1>
    %438 = vector.broadcast %437 : vector<2x1xi1> to vector<2x32xi1>
    %439 = arith.select %438, %434, %408 : vector<2x32xi1>, vector<2x32xf32>
    %440 = vector.shape_cast %436 : vector<2x1xi1> to vector<2x1xi1>
    %441 = vector.broadcast %440 : vector<2x1xi1> to vector<2x32xi1>
    %442 = arith.select %441, %431, %411 : vector<2x32xi1>, vector<2x32xf32>
    %443 = arith.extui %436 : vector<2x1xi1> to vector<2x1xi32>
    %444 = arith.sitofp %443 : vector<2x1xi32> to vector<2x1xf32>
    %445 = vector.broadcast %444 : vector<2x1xf32> to vector<2x32xf32>
    %446 = arith.mulf %445, %434 : vector<2x32xf32>
    %447 = tpu.concatenate %230, %439 in 1 : vector<2x32xf32>, vector<2x32xf32> -> vector<2x64xf32>
    %cst_51 = arith.constant dense<0.000000e+00> : vector<2x128xf32>
    %448 = tpu.matmul %447, %4, %cst_51 {dimension_numbers = #tpu.dot_dimension_numbers<[1], [0], [0], [1], [0, 0, 1, 1], [], []>} : vector<2x64xf32>, vector<64x128xf32>, vector<2x128xf32> -> vector<2x128xf32>
    %449 = vector.broadcast %7 : vector<1x128xf32> to vector<2x128xf32>
    %450 = arith.addf %448, %449 : vector<2x128xf32>
    %451 = arith.negf %450 : vector<2x128xf32>
    %452 = math.exp %451 : vector<2x128xf32>
    %cst_52 = arith.constant 1.000000e+00 : f32
    %453 = vector.broadcast %cst_52 : f32 to vector<2x128xf32>
    %454 = arith.addf %453, %452 : vector<2x128xf32>
    %455 = arith.divf %453, %454 : vector<2x128xf32>
    %456 = vector.extract_strided_slice %450 {offsets = [0, 64], sizes = [2, 32], strides = [1, 1]} : vector<2x128xf32> to vector<2x32xf32>
    %457 = math.tanh %456 : vector<2x32xf32>
    %458 = vector.extract_strided_slice %455 {offsets = [0, 32], sizes = [2, 32], strides = [1, 1]} : vector<2x128xf32> to vector<2x32xf32>
    %459 = arith.mulf %458, %442 : vector<2x32xf32>
    %460 = vector.extract_strided_slice %455 {offsets = [0, 0], sizes = [2, 32], strides = [1, 1]} : vector<2x128xf32> to vector<2x32xf32>
    %461 = arith.mulf %460, %457 : vector<2x32xf32>
    %462 = arith.addf %459, %461 : vector<2x32xf32>
    %463 = vector.extract_strided_slice %455 {offsets = [0, 96], sizes = [2, 32], strides = [1, 1]} : vector<2x128xf32> to vector<2x32xf32>
    %464 = math.tanh %462 : vector<2x32xf32>
    %465 = arith.mulf %463, %464 : vector<2x32xf32>
    %c6_i32_53 = arith.constant 6 : i32
    %466 = vector.broadcast %c6_i32_53 : i32 to vector<2x1xi32>
    %467 = arith.cmpi sgt, %1, %466 : vector<2x1xi32>
    %468 = vector.shape_cast %467 : vector<2x1xi1> to vector<2x1xi1>
    %469 = vector.broadcast %468 : vector<2x1xi1> to vector<2x32xi1>
    %470 = arith.select %469, %465, %439 : vector<2x32xi1>, vector<2x32xf32>
    %471 = vector.shape_cast %467 : vector<2x1xi1> to vector<2x1xi1>
    %472 = vector.broadcast %471 : vector<2x1xi1> to vector<2x32xi1>
    %473 = arith.select %472, %462, %442 : vector<2x32xi1>, vector<2x32xf32>
    %474 = arith.extui %467 : vector<2x1xi1> to vector<2x1xi32>
    %475 = arith.sitofp %474 : vector<2x1xi32> to vector<2x1xf32>
    %476 = vector.broadcast %475 : vector<2x1xf32> to vector<2x32xf32>
    %477 = arith.mulf %476, %465 : vector<2x32xf32>
    %478 = tpu.concatenate %260, %470 in 1 : vector<2x32xf32>, vector<2x32xf32> -> vector<2x64xf32>
    %cst_54 = arith.constant dense<0.000000e+00> : vector<2x128xf32>
    %479 = tpu.matmul %478, %4, %cst_54 {dimension_numbers = #tpu.dot_dimension_numbers<[1], [0], [0], [1], [0, 0, 1, 1], [], []>} : vector<2x64xf32>, vector<64x128xf32>, vector<2x128xf32> -> vector<2x128xf32>
    %480 = vector.broadcast %7 : vector<1x128xf32> to vector<2x128xf32>
    %481 = arith.addf %479, %480 : vector<2x128xf32>
    %482 = arith.negf %481 : vector<2x128xf32>
    %483 = math.exp %482 : vector<2x128xf32>
    %cst_55 = arith.constant 1.000000e+00 : f32
    %484 = vector.broadcast %cst_55 : f32 to vector<2x128xf32>
    %485 = arith.addf %484, %483 : vector<2x128xf32>
    %486 = arith.divf %484, %485 : vector<2x128xf32>
    %487 = vector.extract_strided_slice %481 {offsets = [0, 64], sizes = [2, 32], strides = [1, 1]} : vector<2x128xf32> to vector<2x32xf32>
    %488 = math.tanh %487 : vector<2x32xf32>
    %489 = vector.extract_strided_slice %486 {offsets = [0, 32], sizes = [2, 32], strides = [1, 1]} : vector<2x128xf32> to vector<2x32xf32>
    %490 = arith.mulf %489, %473 : vector<2x32xf32>
    %491 = vector.extract_strided_slice %486 {offsets = [0, 0], sizes = [2, 32], strides = [1, 1]} : vector<2x128xf32> to vector<2x32xf32>
    %492 = arith.mulf %491, %488 : vector<2x32xf32>
    %493 = arith.addf %490, %492 : vector<2x32xf32>
    %494 = vector.extract_strided_slice %486 {offsets = [0, 96], sizes = [2, 32], strides = [1, 1]} : vector<2x128xf32> to vector<2x32xf32>
    %495 = math.tanh %493 : vector<2x32xf32>
    %496 = arith.mulf %494, %495 : vector<2x32xf32>
    %c7_i32_56 = arith.constant 7 : i32
    %497 = vector.broadcast %c7_i32_56 : i32 to vector<2x1xi32>
    %498 = arith.cmpi sgt, %1, %497 : vector<2x1xi32>
    %499 = vector.shape_cast %498 : vector<2x1xi1> to vector<2x1xi1>
    %500 = vector.broadcast %499 : vector<2x1xi1> to vector<2x32xi1>
    %501 = arith.select %500, %496, %470 : vector<2x32xi1>, vector<2x32xf32>
    %502 = vector.shape_cast %498 : vector<2x1xi1> to vector<2x1xi1>
    %503 = vector.broadcast %502 : vector<2x1xi1> to vector<2x32xi1>
    %504 = arith.select %503, %493, %473 : vector<2x32xi1>, vector<2x32xf32>
    %505 = arith.extui %498 : vector<2x1xi1> to vector<2x1xi32>
    %506 = arith.sitofp %505 : vector<2x1xi32> to vector<2x1xf32>
    %507 = vector.broadcast %506 : vector<2x1xf32> to vector<2x32xf32>
    %508 = arith.mulf %507, %496 : vector<2x32xf32>
    %509 = vector.extract_strided_slice %291 {offsets = [0, 0], sizes = [1, 32], strides = [1, 1]} : vector<2x32xf32> to vector<1x32xf32>
    %510 = vector.extract_strided_slice %322 {offsets = [0, 0], sizes = [1, 32], strides = [1, 1]} : vector<2x32xf32> to vector<1x32xf32>
    %511 = vector.extract_strided_slice %353 {offsets = [0, 0], sizes = [1, 32], strides = [1, 1]} : vector<2x32xf32> to vector<1x32xf32>
    %512 = vector.extract_strided_slice %384 {offsets = [0, 0], sizes = [1, 32], strides = [1, 1]} : vector<2x32xf32> to vector<1x32xf32>
    %513 = vector.extract_strided_slice %415 {offsets = [0, 0], sizes = [1, 32], strides = [1, 1]} : vector<2x32xf32> to vector<1x32xf32>
    %514 = vector.extract_strided_slice %446 {offsets = [0, 0], sizes = [1, 32], strides = [1, 1]} : vector<2x32xf32> to vector<1x32xf32>
    %515 = vector.extract_strided_slice %477 {offsets = [0, 0], sizes = [1, 32], strides = [1, 1]} : vector<2x32xf32> to vector<1x32xf32>
    %516 = vector.extract_strided_slice %508 {offsets = [0, 0], sizes = [1, 32], strides = [1, 1]} : vector<2x32xf32> to vector<1x32xf32>
    %517 = vector.extract_strided_slice %291 {offsets = [1, 0], sizes = [1, 32], strides = [1, 1]} : vector<2x32xf32> to vector<1x32xf32>
    %518 = vector.extract_strided_slice %322 {offsets = [1, 0], sizes = [1, 32], strides = [1, 1]} : vector<2x32xf32> to vector<1x32xf32>
    %519 = vector.extract_strided_slice %353 {offsets = [1, 0], sizes = [1, 32], strides = [1, 1]} : vector<2x32xf32> to vector<1x32xf32>
    %520 = vector.extract_strided_slice %384 {offsets = [1, 0], sizes = [1, 32], strides = [1, 1]} : vector<2x32xf32> to vector<1x32xf32>
    %521 = vector.extract_strided_slice %415 {offsets = [1, 0], sizes = [1, 32], strides = [1, 1]} : vector<2x32xf32> to vector<1x32xf32>
    %522 = vector.extract_strided_slice %446 {offsets = [1, 0], sizes = [1, 32], strides = [1, 1]} : vector<2x32xf32> to vector<1x32xf32>
    %523 = vector.extract_strided_slice %477 {offsets = [1, 0], sizes = [1, 32], strides = [1, 1]} : vector<2x32xf32> to vector<1x32xf32>
    %524 = vector.extract_strided_slice %508 {offsets = [1, 0], sizes = [1, 32], strides = [1, 1]} : vector<2x32xf32> to vector<1x32xf32>
    %525 = tpu.concatenate %509, %510, %511, %512, %513, %514, %515, %516, %517, %518, %519, %520, %521, %522, %523, %524 in 0 : vector<1x32xf32>, vector<1x32xf32>, vector<1x32xf32>, vector<1x32xf32>, vector<1x32xf32>, vector<1x32xf32>, vector<1x32xf32>, vector<1x32xf32>, vector<1x32xf32>, vector<1x32xf32>, vector<1x32xf32>, vector<1x32xf32>, vector<1x32xf32>, vector<1x32xf32>, vector<1x32xf32>, vector<1x32xf32> -> vector<16x32xf32>
    %cst_57 = arith.constant dense<0.000000e+00> : vector<16x128xf32>
    %526 = tpu.matmul %525, %5, %cst_57 {dimension_numbers = #tpu.dot_dimension_numbers<[1], [0], [0], [1], [0, 0, 1, 1], [], []>} : vector<16x32xf32>, vector<32x128xf32>, vector<16x128xf32> -> vector<16x128xf32>
    %527 = vector.broadcast %8 : vector<1x128xf32> to vector<16x128xf32>
    %528 = arith.addf %526, %527 : vector<16x128xf32>
    %c0_58 = arith.constant 0 : index
    %c0_59 = arith.constant 0 : index
    %529 = vector.load %arg4[%c0_58, %c0_59] : memref<16x128xf32, #tpu.memory_space<vmem>>, vector<16x128xf32>
    tpu.vector_store %arg4[%c0_58, %c0_59], %528 {strides = array<i32>} : memref<16x128xf32, #tpu.memory_space<vmem>>, vector<16x128xf32>,
    %c0_60 = arith.constant 0 : index
    %c0_61 = arith.constant 0 : index
    %530 = vector.load %arg5[%c0_60, %c0_61] : memref<8x32xf32, #tpu.memory_space<vmem>>, vector<2x32xf32>
    tpu.vector_store %arg5[%c0_60, %c0_61], %253 {strides = array<i32>} : memref<8x32xf32, #tpu.memory_space<vmem>>, vector<2x32xf32>,
    %c2_62 = arith.constant 2 : index
    %c0_63 = arith.constant 0 : index
    %531 = vector.load %arg5[%c2_62, %c0_63] : memref<8x32xf32, #tpu.memory_space<vmem>>, vector<2x32xf32>
    tpu.vector_store %arg5[%c2_62, %c0_63], %501 {strides = array<i32>} : memref<8x32xf32, #tpu.memory_space<vmem>>, vector<2x32xf32>,
    %c4_64 = arith.constant 4 : index
    %c0_65 = arith.constant 0 : index
    %532 = vector.load %arg5[%c4_64, %c0_65] : memref<8x32xf32, #tpu.memory_space<vmem>>, vector<2x32xf32>
    tpu.vector_store %arg5[%c4_64, %c0_65], %256 {strides = array<i32>} : memref<8x32xf32, #tpu.memory_space<vmem>>, vector<2x32xf32>,
    %c6_66 = arith.constant 6 : index
    %c0_67 = arith.constant 0 : index
    %533 = vector.load %arg5[%c6_66, %c0_67] : memref<8x32xf32, #tpu.memory_space<vmem>>, vector<2x32xf32>
    tpu.vector_store %arg5[%c6_66, %c0_67], %504 {strides = array<i32>} : memref<8x32xf32, #tpu.memory_space<vmem>>, vector<2x32xf32>,
    return
  }
}

</mosaic_0001>

<llo_original>
// kernel: chatbot_forward.1
$region0: #{chatbot_forward.1}
  #allocation0 [shape = 'u32[]', space=smem, size = 0x4, offset = 0x4, fixed_abs, tag = 'smem constant byte address 0x4 - core index']
  #allocation1 [shape = 'u32[144,128]{1,0:T(1,128)}', space=vmem, size = 0x12000, scoped, tag = 'internal scratch']
  %s0 = inlined_call_operand.vmem [shape: s32[18,1], index: 0, kind: input, shape index: {}]
  %s1 = inlined_call_operand.vmem [shape: f32[8,32], index: 1, kind: input, shape index: {}]
  %s2 = inlined_call_operand.hbm [shape: f32[192,128], index: 2, kind: input, shape index: {}]
  %s3 = inlined_call_operand.vmem [shape: f32[3,128], index: 3, kind: input, shape index: {}]
  %s4 = inlined_call_operand.hbm [shape: f32[16,128], index: 4, kind: output, shape index: {0}]
  %s5 = inlined_call_operand.vmem [shape: f32[8,32], index: 5, kind: output, shape index: {1}]
  %6 = xla_tuple %s4, %s5
  %s7 = sld [smem:[#allocation0]]
  $region38: #{chatbot_forward.1} parent=0
    _
  %s9 = ssub.s32 1, %s7
  %s10 = scalar_select 0, %s9, %s7
  $region1: #{chatbot_forward.1} parent=0
    #allocation2 [shape = 'u8[98304]{0}', space=vmem, size = 0x18000, scoped, tag = 'input window, operand 2, single buffered']
    #allocation3 [shape = 's32[1]{0}', space=sflag, size = 0x4, scoped, tag = 'scoped memory for chatbot_forward.1']
    #allocation4 [shape = 's32[1]{0}', space=sflag, size = 0x4, scoped, tag = 'scoped memory for chatbot_forward.1']
    #allocation5 [shape = 'u8[8192]{0}', space=vmem, size = 0x2000, scoped, tag = 'output window, operand 0, single buffered']
    %11 = vsyncpa [#allocation3], 0
    %12 = vsyncpa [#allocation4], 0
    // Predicated region
    $region2: #{chatbot_forward.1} parent=1 // pred_check
      _
    $region3: #{chatbot_forward.1} parent=1 // pred_check_branch
      %14 = sbr.rel (0) target = $region5
    $region4: #{chatbot_forward.1} parent=1 // pred_region
      _
    $region5: #{chatbot_forward.1} parent=1 // pred_fallthru
      _
    // Predicated region
    $region6: #{chatbot_forward.1} parent=1 // pred_check
      _
    $region7: #{chatbot_forward.1} parent=1 // pred_check_branch
      %16 = sbr.rel (0) target = $region9
    $region8: #{chatbot_forward.1} parent=1 // pred_region
      _
    $region9: #{chatbot_forward.1} parent=1 // pred_fallthru
      _
    // Predicated region
    $region10: #{chatbot_forward.1} parent=1 // pred_check
      _
    $region11: #{chatbot_forward.1} parent=1 // pred_check_branch
      %18 = sbr.rel (0) target = $region13
    $region12: #{chatbot_forward.1} parent=1 // pred_region
      %s20 = ssub.s32 3072, 3072
      %21 = vsyncadd [#allocation3], %s20
      %s22 = sshll.u32 [#allocation2], 4
      %s23 = int_to_ptr.vmem [resolvable:$true] %s22
      %28 = dma.hbm_to_vmem [thread:$0]  %s2, 3072, %s23, [#allocation3], 128, 128, 8
    $region13: #{chatbot_forward.1} parent=1 // pred_fallthru
      _
    // Predicated region
    $region14: #{chatbot_forward.1} parent=1 // pred_check
      _
    $region15: #{chatbot_forward.1} parent=1 // pred_check_branch
      %30 = sbr.rel (0) target = $region17
    $region16: #{chatbot_forward.1} parent=1 // pred_region
      _
    $region17: #{chatbot_forward.1} parent=1 // pred_fallthru
      _
    // Predicated region
    $region18: #{chatbot_forward.1} parent=1 // pred_check
      _
    $region19: #{chatbot_forward.1} parent=1 // pred_check_branch
      %32 = sbr.rel (0) target = $region21
    $region20: #{chatbot_forward.1} parent=1 // pred_region
      %33 = dma.done [#allocation3], 3072
    $region21: #{chatbot_forward.1} parent=1 // pred_fallthru
      _
    %v34 = vld [vmem:[%s0] sm:$0xff]
    %v35 = vld [vmem:[%s0 + $0x8] sm:$0xff]
    %v36 = vld [vmem:[%s0 + $0x10] sm:$0x3]
    %v37 = vld [vmem:[#allocation2] sm:$0xff]
    %v38 = vld [vmem:[#allocation2 + $0x8] sm:$0xff]
    %v39 = vld [vmem:[#allocation2 + $0x10] sm:$0xff]
    %v40 = vld [vmem:[#allocation2 + $0x18] sm:$0xff]
    %v41 = vld [vmem:[#allocation2 + $0x20] sm:$0xff]
    %v42 = vld [vmem:[#allocation2 + $0x28] sm:$0xff]
    %v43 = vld [vmem:[#allocation2 + $0x30] sm:$0xff]
    %v44 = vld [vmem:[#allocation2 + $0x38] sm:$0xff]
    %v45 = vld [vmem:[#allocation2 + $0x40] sm:$0xff]
    %v46 = vld [vmem:[#allocation2 + $0x48] sm:$0xff]
    %v47 = vld [vmem:[#allocation2 + $0x50] sm:$0xff]
    %v48 = vld [vmem:[#allocation2 + $0x58] sm:$0xff]
    %v49 = vld [vmem:[#allocation2 + $0x60] sm:$0xff]
    %v50 = vld [vmem:[#allocation2 + $0x68] sm:$0xff]
    %v51 = vld [vmem:[#allocation2 + $0x70] sm:$0xff]
    %v52 = vld [vmem:[#allocation2 + $0x78] sm:$0xff]
    %v53 = vld [vmem:[#allocation2 + $0x80] sm:$0xff]
    %v54 = vld [vmem:[#allocation2 + $0x88] sm:$0xff]
    %v55 = vld [vmem:[#allocation2 + $0x90] sm:$0xff]
    %v56 = vld [vmem:[#allocation2 + $0x98] sm:$0xff]
    %v57 = vld [vmem:[#allocation2 + $0xa0] sm:$0xff]
    %v58 = vld [vmem:[#allocation2 + $0xa8] sm:$0xff]
    %v59 = vld [vmem:[#allocation2 + $0xb0] sm:$0xff]
    %v60 = vld [vmem:[#allocation2 + $0xb8] sm:$0xff]
    %v61 = vld [vmem:[%s3] sm:$0x1]
    %v62 = vld [vmem:[%s3 + $0x1] sm:$0x1]
    %v63 = vld [vmem:[%s3 + $0x2] sm:$0x1]
    %v64 = vld [vmem:[%s1] sm:$0x3]
    %v65 = vld [vmem:[%s1 + $0x2] sm:$0x3]
    %v66 = vld [vmem:[%s1 + $0x4] sm:$0x3]
    %v67 = vld [vmem:[%s1 + $0x6] sm:$0x3]
    %v68 = vlaneseq
    %v69 = vand.u32 %v68, 127
    %70 = vset.pattern.permute.xlu0 0
    %71 = vperm.xlu0 %70, %v34
    %v72 = vpop.permute.xlu0 %71
    %73 = vset.pattern.permute.xlu0 0
    %74 = vperm.xlu0 %73, %v35
    %v75 = vpop.permute.xlu0 %74
    %vm76 = vcmp.eq.s32.totalorder %v69, %v72
    %vm77 = vcmp.eq.s32.totalorder %v69, %v75
    %v78 = vsel %vm76, 1, 0
    %v79 = vsel %vm77, 1, 0
    %v80 = vcvt.s32.f32 %v78
    %v81 = vcvt.s32.f32 %v79
    %v82 = vlaneseq
    %v83 = vshrl.u32 %v82, 7
    %v84 = vsub.s32 0, %v83
    %v85 = vrot.slane %v61, %v84
    %vm86 = vcmask 523264
    %v88 = vsel %vm86, %v80, 0
    %v91 = vsel %vm86, %v81, 0
    %93 = vmatprep.subr.mxu0 0.0
    %94 = vmatpush1.msra.mxu0 %v37
    %95 = vmatprep.subr.mxu0 0.0
    %96 = vmatpush1.msra.mxu0 %v38
    %97 = vmatprep.subr.mxu0 0.0
    %98 = vmatpush1.msra.mxu0 %v39
    %99 = vmatprep.subr.mxu0 0.0
    %100 = vmatpush1.msra.mxu0 %v40
    %101 = vmatprep.subr.mxu0 0.0
    %102 = vmatpush1.msra.mxu0 %v41
    %103 = vmatprep.subr.mxu0 0.0
    %104 = vmatpush1.msra.mxu0 %v42
    %105 = vmatprep.subr.mxu0 0.0
    %106 = vmatpush1.msra.mxu0 %v43
    %107 = vmatprep.subr.mxu0 0.0
    %108 = vmatpush1.msra.mxu0 %v44
    %109 = vmatprep.subr.mxu0 0.0
    %110 = vmatpush1.msra.mxu0 0.0
    %111 = vmatprep.subr.mxu0 0.0
    %112 = vmatpush1.msra.mxu0 0.0
    %113 = vmatprep.subr.mxu0 0.0
    %114 = vmatpush1.msra.mxu0 0.0
    %115 = vmatprep.subr.mxu0 0.0
    %116 = vmatpush1.msra.mxu0 0.0
    %117 = vmatprep.subr.mxu0 0.0
    %118 = vmatpush1.msra.mxu0 0.0
    %119 = vmatprep.subr.mxu0 0.0
    %120 = vmatpush1.msra.mxu0 0.0
    %121 = vmatprep.subr.mxu0 0.0
    %122 = vmatpush1.msra.mxu0 0.0
    %123 = vmatprep.subr.mxu0 0.0
    %124 = vmatpush1.msra.mxu0 0.0
    %125 = vmatprep.subr.mxu0 0.0
    %126 = vmatpush1.msra.mxu0 0.0
    %127 = vmatprep.subr.mxu0 0.0
    %128 = vmatpush1.msra.mxu0 0.0
    %129 = vmatprep.subr.mxu0 0.0
    %130 = vmatpush1.msra.mxu0 0.0
    %131 = vmatprep.subr.mxu0 0.0
    %132 = vmatpush1.msra.mxu0 0.0
    %133 = vmatprep.subr.mxu0 0.0
    %134 = vmatpush1.msra.mxu0 0.0
    %135 = vmatprep.subr.mxu0 0.0
    %136 = vmatpush1.msra.mxu0 0.0
    %137 = vmatprep.subr.mxu0 0.0
    %138 = vmatpush1.msra.mxu0 0.0
    %139 = vmatprep.subr.mxu0 0.0
    %140 = vmatpush1.msra.mxu0 0.0
    %141 = vmatprep.subr.mxu0 0.0
    %142 = vmatpush1.msra.mxu0 0.0
    %143 = vmatprep.subr.mxu0 0.0
    %144 = vmatpush1.msra.mxu0 0.0
    %145 = vmatprep.subr.mxu0 0.0
    %146 = vmatpush1.msra.mxu0 0.0
    %147 = vmatprep.subr.mxu0 0.0
    %148 = vmatpush1.msra.mxu0 0.0
    %149 = vmatprep.subr.mxu0 0.0
    %150 = vmatpush1.msra.mxu0 0.0
    %151 = vmatprep.subr.mxu0 0.0
    %152 = vmatpush1.msra.mxu0 0.0
    %153 = vmatprep.subr.mxu0 0.0
    %154 = vmatpush1.msra.mxu0 0.0
    %155 = vmatprep.subr.mxu0 0.0
    %156 = vmatpush1.msra.mxu0 0.0
    %157 = vmatprep.mubr.f32.mxu0 0.0
    %158 = vmatmul.mubr.f32.gmra.mrb[0].mxu0 %v88
    %v159 = vpop.f32.mrb[0].mxu0
    %v160 = vadd.f32 %v85, %v159
    %v161 = vpop.f32.mrb[0].mxu0
    %162 = vmatprep.mubr.f32.mxu0 0.0
    %163 = vmatmul.mubr.f32.gmra.mrb[0].mxu0 %v91
    %v164 = vpop.f32.mrb[0].mxu0
    %v165 = vadd.f32 %v85, %v164
    %v166 = vpop.f32.mrb[0].mxu0
    %167 = vdwg.mxu0
    %vm168 = vcmask 261120
    %v170 = vsel %vm168, %v64, 0
    %172 = vmatprep.subr.mxu0 0.0
    %173 = vmatpush1.msra.mxu0 %v45
    %174 = vmatprep.subr.mxu0 0.0
    %175 = vmatpush1.msra.mxu0 %v46
    %176 = vmatprep.subr.mxu0 0.0
    %177 = vmatpush1.msra.mxu0 %v47
    %178 = vmatprep.subr.mxu0 0.0
    %179 = vmatpush1.msra.mxu0 %v48
    %180 = vmatprep.subr.mxu0 0.0
    %181 = vmatpush1.msra.mxu0 0.0
    %182 = vmatprep.subr.mxu0 0.0
    %183 = vmatpush1.msra.mxu0 0.0
    %184 = vmatprep.subr.mxu0 0.0
    %185 = vmatpush1.msra.mxu0 0.0
    %186 = vmatprep.subr.mxu0 0.0
    %187 = vmatpush1.msra.mxu0 0.0
    %188 = vmatprep.subr.mxu0 0.0
    %189 = vmatpush1.msra.mxu0 0.0
    %190 = vmatprep.subr.mxu0 0.0
    %191 = vmatpush1.msra.mxu0 0.0
    %192 = vmatprep.subr.mxu0 0.0
    %193 = vmatpush1.msra.mxu0 0.0
    %194 = vmatprep.subr.mxu0 0.0
    %195 = vmatpush1.msra.mxu0 0.0
    %196 = vmatprep.subr.mxu0 0.0
    %197 = vmatpush1.msra.mxu0 0.0
    %198 = vmatprep.subr.mxu0 0.0
    %199 = vmatpush1.msra.mxu0 0.0
    %200 = vmatprep.subr.mxu0 0.0
    %201 = vmatpush1.msra.mxu0 0.0
    %202 = vmatprep.subr.mxu0 0.0
    %203 = vmatpush1.msra.mxu0 0.0
    %204 = vmatprep.subr.mxu0 0.0
    %205 = vmatpush1.msra.mxu0 0.0
    %206 = vmatprep.subr.mxu0 0.0
    %207 = vmatpush1.msra.mxu0 0.0
    %208 = vmatprep.subr.mxu0 0.0
    %209 = vmatpush1.msra.mxu0 0.0
    %210 = vmatprep.subr.mxu0 0.0
    %211 = vmatpush1.msra.mxu0 0.0
    %212 = vmatprep.subr.mxu0 0.0
    %213 = vmatpush1.msra.mxu0 0.0
    %214 = vmatprep.subr.mxu0 0.0
    %215 = vmatpush1.msra.mxu0 0.0
    %216 = vmatprep.subr.mxu0 0.0
    %217 = vmatpush1.msra.mxu0 0.0
    %218 = vmatprep.subr.mxu0 0.0
    %219 = vmatpush1.msra.mxu0 0.0
    %220 = vmatprep.subr.mxu0 0.0
    %221 = vmatpush1.msra.mxu0 0.0
    %222 = vmatprep.subr.mxu0 0.0
    %223 = vmatpush1.msra.mxu0 0.0
    %224 = vmatprep.subr.mxu0 0.0
    %225 = vmatpush1.msra.mxu0 0.0
    %226 = vmatprep.subr.mxu0 0.0
    %227 = vmatpush1.msra.mxu0 0.0
    %228 = vmatprep.subr.mxu0 0.0
    %229 = vmatpush1.msra.mxu0 0.0
    %230 = vmatprep.subr.mxu0 0.0
    %231 = vmatpush1.msra.mxu0 0.0
    %232 = vmatprep.subr.mxu0 0.0
    %233 = vmatpush1.msra.mxu0 0.0
    %234 = vmatprep.subr.mxu0 0.0
    %235 = vmatpush1.msra.mxu0 0.0
    %236 = vmatprep.mubr.f32.mxu0 0.0
    %237 = vmatmul.mubr.f32.gmra.mrb[0].mxu0 %v170
    %v238 = vpop.f32.mrb[0].mxu0
    %v239 = vadd.f32 0.0, %v238
    %v240 = vpop.f32.mrb[0].mxu0
    %241 = vdwg.mxu0
    %v242 = vadd.f32 %v160, %v239
    %v243 = vxor.u32 %v242, 2147483648
    %v244 = vmul.f32 %v243, 1.442695
    %v245 = vpow.pop %v244
    %v246 = vadd.f32 %v245, 1.0
    %v247 = vrcp.pop %v246
    %v248 = vmul.f32 1.0, %v247
    %v249 = vtanh.pop %v242
    %251 = vrot.lane.b32.xlu0 %v66, 32
    %v252 = vpop.permute.xlu0 %251
    %v254 = vmul.f32 %v248, %v252
    %256 = vrot.lane.b32.xlu0 %v249, 64
    %v257 = vpop.permute.xlu0 %256
    %v259 = vmul.f32 %v248, %v257
    %261 = vrot.lane.b32.xlu0 %v259, 32
    %v262 = vpop.permute.xlu0 %261
    %v264 = vadd.f32 %v254, %v262
    %v265 = vtanh.pop %v264
    %267 = vrot.lane.b32.xlu0 %v265, 64
    %v268 = vpop.permute.xlu0 %267
    %v270 = vmul.f32 %v248, %v268
    %vm271 = vcmp.gt.s32.totalorder %v36, 0
    %v272 = vsel %vm271, 1, 0
    %273 = vset.pattern.permute.xlu0 0
    %274 = vperm.xlu0 %273, %v272
    %v275 = vpop.permute.xlu0 %274
    %vm276 = vcmp.eq.s32.totalorder %v275, 1
    %277 = vrot.lane.b32.xlu0 %v64, 96
    %v278 = vpop.permute.xlu0 %277
    %v280 = vsel %vm276, %v270, %v278
    %v281 = vsel %vm276, %v264, %v252
    %v282 = vcvt.s32.f32 %v272
    %284 = vset.pattern.permute.xlu0 0
    %285 = vperm.xlu0 %284, %v282
    %v286 = vpop.permute.xlu0 %285
    %v288 = vmul.f32 %v286, %v270
    %290 = vrot.lane.b32.xlu0 %v280, 32
    %v291 = vpop.permute.xlu0 %290
    %v292 = vsel %vm168, %v291, 0
    %294 = vmatprep.subr.mxu0 0.0
    %295 = vmatpush1.msra.mxu0 %v45
    %296 = vmatprep.subr.mxu0 0.0
    %297 = vmatpush1.msra.mxu0 %v46
    %298 = vmatprep.subr.mxu0 0.0
    %299 = vmatpush1.msra.mxu0 %v47
    %300 = vmatprep.subr.mxu0 0.0
    %301 = vmatpush1.msra.mxu0 %v48
    %302 = vmatprep.subr.mxu0 0.0
    %303 = vmatpush1.msra.mxu0 0.0
    %304 = vmatprep.subr.mxu0 0.0
    %305 = vmatpush1.msra.mxu0 0.0
    %306 = vmatprep.subr.mxu0 0.0
    %307 = vmatpush1.msra.mxu0 0.0
    %308 = vmatprep.subr.mxu0 0.0
    %309 = vmatpush1.msra.mxu0 0.0
    %310 = vmatprep.subr.mxu0 0.0
    %311 = vmatpush1.msra.mxu0 0.0
    %312 = vmatprep.subr.mxu0 0.0
    %313 = vmatpush1.msra.mxu0 0.0
    %314 = vmatprep.subr.mxu0 0.0
    %315 = vmatpush1.msra.mxu0 0.0
    %316 = vmatprep.subr.mxu0 0.0
    %317 = vmatpush1.msra.mxu0 0.0
    %318 = vmatprep.subr.mxu0 0.0
    %319 = vmatpush1.msra.mxu0 0.0
    %320 = vmatprep.subr.mxu0 0.0
    %321 = vmatpush1.msra.mxu0 0.0
    %322 = vmatprep.subr.mxu0 0.0
    %323 = vmatpush1.msra.mxu0 0.0
    %324 = vmatprep.subr.mxu0 0.0
    %325 = vmatpush1.msra.mxu0 0.0
    %326 = vmatprep.subr.mxu0 0.0
    %327 = vmatpush1.msra.mxu0 0.0
    %328 = vmatprep.subr.mxu0 0.0
    %329 = vmatpush1.msra.mxu0 0.0
    %330 = vmatprep.subr.mxu0 0.0
    %331 = vmatpush1.msra.mxu0 0.0
    %332 = vmatprep.subr.mxu0 0.0
    %333 = vmatpush1.msra.mxu0 0.0
    %334 = vmatprep.subr.mxu0 0.0
    %335 = vmatpush1.msra.mxu0 0.0
    %336 = vmatprep.subr.mxu0 0.0
    %337 = vmatpush1.msra.mxu0 0.0
    %338 = vmatprep.subr.mxu0 0.0
    %339 = vmatpush1.msra.mxu0 0.0
    %340 = vmatprep.subr.mxu0 0.0
    %341 = vmatpush1.msra.mxu0 0.0
    %342 = vmatprep.subr.mxu0 0.0
    %343 = vmatpush1.msra.mxu0 0.0
    %344 = vmatprep.subr.mxu0 0.0
    %345 = vmatpush1.msra.mxu0 0.0
    %346 = vmatprep.subr.mxu0 0.0
    %347 = vmatpush1.msra.mxu0 0.0
    %348 = vmatprep.subr.mxu0 0.0
    %349 = vmatpush1.msra.mxu0 0.0
    %350 = vmatprep.subr.mxu0 0.0
    %351 = vmatpush1.msra.mxu0 0.0
    %352 = vmatprep.subr.mxu0 0.0
    %353 = vmatpush1.msra.mxu0 0.0
    %354 = vmatprep.subr.mxu0 0.0
    %355 = vmatpush1.msra.mxu0 0.0
    %356 = vmatprep.subr.mxu0 0.0
    %357 = vmatpush1.msra.mxu0 0.0
    %358 = vmatprep.mubr.f32.mxu0 0.0
    %359 = vmatmul.mubr.f32.gmra.mrb[0].mxu0 %v292
    %v360 = vpop.f32.mrb[0].mxu0
    %v361 = vadd.f32 0.0, %v360
    %v362 = vpop.f32.mrb[0].mxu0
    %363 = vdwg.mxu0
    %v365 = vrot.slane %v361, 6
    %v367 = vadd.f32 %v160, %v365
    %v368 = vxor.u32 %v367, 2147483648
    %v369 = vmul.f32 %v368, 1.442695
    %v370 = vpow.pop %v369
    %v371 = vadd.f32 %v370, 1.0
    %v372 = vrcp.pop %v371
    %v373 = vmul.f32 1.0, %v372
    %v374 = vtanh.pop %v367
    %v376 = vrot.slane %v281, 6
    %v378 = vmul.f32 %v373, %v376
    %380 = vrot.lane.b32.xlu0 %v374, 64
    %v381 = vpop.permute.xlu0 %380
    %v383 = vmul.f32 %v373, %v381
    %385 = vrot.lane.b32.xlu0 %v383, 32
    %v386 = vpop.permute.xlu0 %385
    %v388 = vadd.f32 %v378, %v386
    %v389 = vtanh.pop %v388
    %391 = vrot.lane.b32.xlu0 %v389, 64
    %v392 = vpop.permute.xlu0 %391
    %v394 = vmul.f32 %v373, %v392
    %vm395 = vcmp.gt.s32.totalorder %v36, 1
    %v396 = vsel %vm395, 1, 0
    %397 = vset.pattern.permute.xlu0 0
    %398 = vperm.xlu0 %397, %v396
    %v399 = vpop.permute.xlu0 %398
    %vm400 = vcmp.eq.s32.totalorder %v399, 1
    %v402 = vrot.slane %v394, 2
    %403 = vrot.lane.b32.xlu0 %v402, 32
    %v404 = vpop.permute.xlu0 %403
    %v407 = vsel %vm400, %v404, %v291
    %v409 = vrot.slane %v388, 2
    %410 = vrot.lane.b32.xlu0 %v409, 96
    %v411 = vpop.permute.xlu0 %410
    %413 = vrot.lane.b32.xlu0 %v281, 96
    %v414 = vpop.permute.xlu0 %413
    %v416 = vsel %vm400, %v411, %v414
    %v417 = vcvt.s32.f32 %v396
    %419 = vset.pattern.permute.xlu0 0
    %420 = vperm.xlu0 %419, %v417
    %v421 = vpop.permute.xlu0 %420
    %v423 = vmul.f32 %v421, %v404
    %v425 = vsel %vm168, %v407, 0
    %427 = vmatprep.subr.mxu0 0.0
    %428 = vmatpush1.msra.mxu0 %v45
    %429 = vmatprep.subr.mxu0 0.0
    %430 = vmatpush1.msra.mxu0 %v46
    %431 = vmatprep.subr.mxu0 0.0
    %432 = vmatpush1.msra.mxu0 %v47
    %433 = vmatprep.subr.mxu0 0.0
    %434 = vmatpush1.msra.mxu0 %v48
    %435 = vmatprep.subr.mxu0 0.0
    %436 = vmatpush1.msra.mxu0 0.0
    %437 = vmatprep.subr.mxu0 0.0
    %438 = vmatpush1.msra.mxu0 0.0
    %439 = vmatprep.subr.mxu0 0.0
    %440 = vmatpush1.msra.mxu0 0.0
    %441 = vmatprep.subr.mxu0 0.0
    %442 = vmatpush1.msra.mxu0 0.0
    %443 = vmatprep.subr.mxu0 0.0
    %444 = vmatpush1.msra.mxu0 0.0
    %445 = vmatprep.subr.mxu0 0.0
    %446 = vmatpush1.msra.mxu0 0.0
    %447 = vmatprep.subr.mxu0 0.0
    %448 = vmatpush1.msra.mxu0 0.0
    %449 = vmatprep.subr.mxu0 0.0
    %450 = vmatpush1.msra.mxu0 0.0
    %451 = vmatprep.subr.mxu0 0.0
    %452 = vmatpush1.msra.mxu0 0.0
    %453 = vmatprep.subr.mxu0 0.0
    %454 = vmatpush1.msra.mxu0 0.0
    %455 = vmatprep.subr.mxu0 0.0
    %456 = vmatpush1.msra.mxu0 0.0
    %457 = vmatprep.subr.mxu0 0.0
    %458 = vmatpush1.msra.mxu0 0.0
    %459 = vmatprep.subr.mxu0 0.0
    %460 = vmatpush1.msra.mxu0 0.0
    %461 = vmatprep.subr.mxu0 0.0
    %462 = vmatpush1.msra.mxu0 0.0
    %463 = vmatprep.subr.mxu0 0.0
    %464 = vmatpush1.msra.mxu0 0.0
    %465 = vmatprep.subr.mxu0 0.0
    %466 = vmatpush1.msra.mxu0 0.0
    %467 = vmatprep.subr.mxu0 0.0
    %468 = vmatpush1.msra.mxu0 0.0
    %469 = vmatprep.subr.mxu0 0.0
    %470 = vmatpush1.msra.mxu0 0.0
    %471 = vmatprep.subr.mxu0 0.0
    %472 = vmatpush1.msra.mxu0 0.0
    %473 = vmatprep.subr.mxu0 0.0
    %474 = vmatpush1.msra.mxu0 0.0
    %475 = vmatprep.subr.mxu0 0.0
    %476 = vmatpush1.msra.mxu0 0.0
    %477 = vmatprep.subr.mxu0 0.0
    %478 = vmatpush1.msra.mxu0 0.0
    %479 = vmatprep.subr.mxu0 0.0
    %480 = vmatpush1.msra.mxu0 0.0
    %481 = vmatprep.subr.mxu0 0.0
    %482 = vmatpush1.msra.mxu0 0.0
    %483 = vmatprep.subr.mxu0 0.0
    %484 = vmatpush1.msra.mxu0 0.0
    %485 = vmatprep.subr.mxu0 0.0
    %486 = vmatpush1.msra.mxu0 0.0
    %487 = vmatprep.subr.mxu0 0.0
    %488 = vmatpush1.msra.mxu0 0.0
    %489 = vmatprep.subr.mxu0 0.0
    %490 = vmatpush1.msra.mxu0 0.0
    %491 = vmatprep.mubr.f32.mxu0 0.0
    %492 = vmatmul.mubr.f32.gmra.mrb[0].mxu0 %v425
    %v493 = vpop.f32.mrb[0].mxu0
    %v494 = vadd.f32 0.0, %v493
    %v495 = vpop.f32.mrb[0].mxu0
    %496 = vdwg.mxu0
    %v498 = vrot.slane %v494, 4
    %v500 = vadd.f32 %v160, %v498
    %v501 = vxor.u32 %v500, 2147483648
    %v502 = vmul.f32 %v501, 1.442695
    %v503 = vpow.pop %v502
    %v504 = vadd.f32 %v503, 1.0
    %v505 = vrcp.pop %v504
    %v506 = vmul.f32 1.0, %v505
    %v507 = vtanh.pop %v500
    %v509 = vrot.slane %v416, 4
    %510 = vrot.lane.b32.xlu0 %v509, 32
    %v511 = vpop.permute.xlu0 %510
    %v513 = vmul.f32 %v506, %v511
    %515 = vrot.lane.b32.xlu0 %v507, 64
    %v516 = vpop.permute.xlu0 %515
    %v518 = vmul.f32 %v506, %v516
    %520 = vrot.lane.b32.xlu0 %v518, 32
    %v521 = vpop.permute.xlu0 %520
    %v523 = vadd.f32 %v513, %v521
    %v524 = vtanh.pop %v523
    %526 = vrot.lane.b32.xlu0 %v524, 64
    %v527 = vpop.permute.xlu0 %526
    %v529 = vmul.f32 %v506, %v527
    %vm530 = vcmp.gt.s32.totalorder %v36, 2
    %v531 = vsel %vm530, 1, 0
    %532 = vset.pattern.permute.xlu0 0
    %533 = vperm.xlu0 %532, %v531
    %v534 = vpop.permute.xlu0 %533
    %vm535 = vcmp.eq.s32.totalorder %v534, 1
    %v537 = vrot.slane %v529, 4
    %538 = vrot.lane.b32.xlu0 %v537, 32
    %v539 = vpop.permute.xlu0 %538
    %v541 = vsel %vm535, %v539, %v407
    %v543 = vrot.slane %v523, 4
    %544 = vrot.lane.b32.xlu0 %v543, 96
    %v545 = vpop.permute.xlu0 %544
    %v547 = vsel %vm535, %v545, %v416
    %v548 = vcvt.s32.f32 %v531
    %550 = vset.pattern.permute.xlu0 0
    %551 = vperm.xlu0 %550, %v548
    %v552 = vpop.permute.xlu0 %551
    %v554 = vmul.f32 %v552, %v539
    %v556 = vsel %vm168, %v541, 0
    %558 = vmatprep.subr.mxu0 0.0
    %559 = vmatpush1.msra.mxu0 %v45
    %560 = vmatprep.subr.mxu0 0.0
    %561 = vmatpush1.msra.mxu0 %v46
    %562 = vmatprep.subr.mxu0 0.0
    %563 = vmatpush1.msra.mxu0 %v47
    %564 = vmatprep.subr.mxu0 0.0
    %565 = vmatpush1.msra.mxu0 %v48
    %566 = vmatprep.subr.mxu0 0.0
    %567 = vmatpush1.msra.mxu0 0.0
    %568 = vmatprep.subr.mxu0 0.0
    %569 = vmatpush1.msra.mxu0 0.0
    %570 = vmatprep.subr.mxu0 0.0
    %571 = vmatpush1.msra.mxu0 0.0
    %572 = vmatprep.subr.mxu0 0.0
    %573 = vmatpush1.msra.mxu0 0.0
    %574 = vmatprep.subr.mxu0 0.0
    %575 = vmatpush1.msra.mxu0 0.0
    %576 = vmatprep.subr.mxu0 0.0
    %577 = vmatpush1.msra.mxu0 0.0
    %578 = vmatprep.subr.mxu0 0.0
    %579 = vmatpush1.msra.mxu0 0.0
    %580 = vmatprep.subr.mxu0 0.0
    %581 = vmatpush1.msra.mxu0 0.0
    %582 = vmatprep.subr.mxu0 0.0
    %583 = vmatpush1.msra.mxu0 0.0
    %584 = vmatprep.subr.mxu0 0.0
    %585 = vmatpush1.msra.mxu0 0.0
    %586 = vmatprep.subr.mxu0 0.0
    %587 = vmatpush1.msra.mxu0 0.0
    %588 = vmatprep.subr.mxu0 0.0
    %589 = vmatpush1.msra.mxu0 0.0
    %590 = vmatprep.subr.mxu0 0.0
    %591 = vmatpush1.msra.mxu0 0.0
    %592 = vmatprep.subr.mxu0 0.0
    %593 = vmatpush1.msra.mxu0 0.0
    %594 = vmatprep.subr.mxu0 0.0
    %595 = vmatpush1.msra.mxu0 0.0
    %596 = vmatprep.subr.mxu0 0.0
    %597 = vmatpush1.msra.mxu0 0.0
    %598 = vmatprep.subr.mxu0 0.0
    %599 = vmatpush1.msra.mxu0 0.0
    %600 = vmatprep.subr.mxu0 0.0
    %601 = vmatpush1.msra.mxu0 0.0
    %602 = vmatprep.subr.mxu0 0.0
    %603 = vmatpush1.msra.mxu0 0.0
    %604 = vmatprep.subr.mxu0 0.0
    %605 = vmatpush1.msra.mxu0 0.0
    %606 = vmatprep.subr.mxu0 0.0
    %607 = vmatpush1.msra.mxu0 0.0
    %608 = vmatprep.subr.mxu0 0.0
    %609 = vmatpush1.msra.mxu0 0.0
    %610 = vmatprep.subr.mxu0 0.0
    %611 = vmatpush1.msra.mxu0 0.0
    %612 = vmatprep.subr.mxu0 0.0
    %613 = vmatpush1.msra.mxu0 0.0
    %614 = vmatprep.subr.mxu0 0.0
    %615 = vmatpush1.msra.mxu0 0.0
    %616 = vmatprep.subr.mxu0 0.0
    %617 = vmatpush1.msra.mxu0 0.0
    %618 = vmatprep.subr.mxu0 0.0
    %619 = vmatpush1.msra.mxu0 0.0
    %620 = vmatprep.subr.mxu0 0.0
    %621 = vmatpush1.msra.mxu0 0.0
    %622 = vmatprep.mubr.f32.mxu0 0.0
    %623 = vmatmul.mubr.f32.gmra.mrb[0].mxu0 %v556
    %v624 = vpop.f32.mrb[0].mxu0
    %v625 = vadd.f32 0.0, %v624
    %v626 = vpop.f32.mrb[0].mxu0
    %627 = vdwg.mxu0
    %v629 = vrot.slane %v625, 2
    %v631 = vadd.f32 %v160, %v629
    %v632 = vxor.u32 %v631, 2147483648
    %v633 = vmul.f32 %v632, 1.442695
    %v634 = vpow.pop %v633
    %v635 = vadd.f32 %v634, 1.0
    %v636 = vrcp.pop %v635
    %v637 = vmul.f32 1.0, %v636
    %v638 = vtanh.pop %v631
    %v640 = vrot.slane %v547, 2
    %641 = vrot.lane.b32.xlu0 %v640, 32
    %v642 = vpop.permute.xlu0 %641
    %v644 = vmul.f32 %v637, %v642
    %646 = vrot.lane.b32.xlu0 %v638, 64
    %v647 = vpop.permute.xlu0 %646
    %v649 = vmul.f32 %v637, %v647
    %651 = vrot.lane.b32.xlu0 %v649, 32
    %v652 = vpop.permute.xlu0 %651
    %v654 = vadd.f32 %v644, %v652
    %v655 = vtanh.pop %v654
    %657 = vrot.lane.b32.xlu0 %v655, 64
    %v658 = vpop.permute.xlu0 %657
    %v660 = vmul.f32 %v637, %v658
    %vm661 = vcmp.gt.s32.totalorder %v36, 3
    %v662 = vsel %vm661, 1, 0
    %663 = vset.pattern.permute.xlu0 0
    %664 = vperm.xlu0 %663, %v662
    %v665 = vpop.permute.xlu0 %664
    %vm666 = vcmp.eq.s32.totalorder %v665, 1
    %v668 = vrot.slane %v660, 6
    %669 = vrot.lane.b32.xlu0 %v668, 32
    %v670 = vpop.permute.xlu0 %669
    %v672 = vsel %vm666, %v670, %v541
    %v674 = vrot.slane %v654, 6
    %675 = vrot.lane.b32.xlu0 %v674, 96
    %v676 = vpop.permute.xlu0 %675
    %v678 = vsel %vm666, %v676, %v547
    %v679 = vcvt.s32.f32 %v662
    %681 = vset.pattern.permute.xlu0 0
    %682 = vperm.xlu0 %681, %v679
    %v683 = vpop.permute.xlu0 %682
    %v685 = vmul.f32 %v683, %v670
    %v687 = vsel %vm168, %v672, 0
    %689 = vmatprep.subr.mxu0 0.0
    %690 = vmatpush1.msra.mxu0 %v45
    %691 = vmatprep.subr.mxu0 0.0
    %692 = vmatpush1.msra.mxu0 %v46
    %693 = vmatprep.subr.mxu0 0.0
    %694 = vmatpush1.msra.mxu0 %v47
    %695 = vmatprep.subr.mxu0 0.0
    %696 = vmatpush1.msra.mxu0 %v48
    %697 = vmatprep.subr.mxu0 0.0
    %698 = vmatpush1.msra.mxu0 0.0
    %699 = vmatprep.subr.mxu0 0.0
    %700 = vmatpush1.msra.mxu0 0.0
    %701 = vmatprep.subr.mxu0 0.0
    %702 = vmatpush1.msra.mxu0 0.0
    %703 = vmatprep.subr.mxu0 0.0
    %704 = vmatpush1.msra.mxu0 0.0
    %705 = vmatprep.subr.mxu0 0.0
    %706 = vmatpush1.msra.mxu0 0.0
    %707 = vmatprep.subr.mxu0 0.0
    %708 = vmatpush1.msra.mxu0 0.0
    %709 = vmatprep.subr.mxu0 0.0
    %710 = vmatpush1.msra.mxu0 0.0
    %711 = vmatprep.subr.mxu0 0.0
    %712 = vmatpush1.msra.mxu0 0.0
    %713 = vmatprep.subr.mxu0 0.0
    %714 = vmatpush1.msra.mxu0 0.0
    %715 = vmatprep.subr.mxu0 0.0
    %716 = vmatpush1.msra.mxu0 0.0
    %717 = vmatprep.subr.mxu0 0.0
    %718 = vmatpush1.msra.mxu0 0.0
    %719 = vmatprep.subr.mxu0 0.0
    %720 = vmatpush1.msra.mxu0 0.0
    %721 = vmatprep.subr.mxu0 0.0
    %722 = vmatpush1.msra.mxu0 0.0
    %723 = vmatprep.subr.mxu0 0.0
    %724 = vmatpush1.msra.mxu0 0.0
    %725 = vmatprep.subr.mxu0 0.0
    %726 = vmatpush1.msra.mxu0 0.0
    %727 = vmatprep.subr.mxu0 0.0
    %728 = vmatpush1.msra.mxu0 0.0
    %729 = vmatprep.subr.mxu0 0.0
    %730 = vmatpush1.msra.mxu0 0.0
    %731 = vmatprep.subr.mxu0 0.0
    %732 = vmatpush1.msra.mxu0 0.0
    %733 = vmatprep.subr.mxu0 0.0
    %734 = vmatpush1.msra.mxu0 0.0
    %735 = vmatprep.subr.mxu0 0.0
    %736 = vmatpush1.msra.mxu0 0.0
    %737 = vmatprep.subr.mxu0 0.0
    %738 = vmatpush1.msra.mxu0 0.0
    %739 = vmatprep.subr.mxu0 0.0
    %740 = vmatpush1.msra.mxu0 0.0
    %741 = vmatprep.subr.mxu0 0.0
    %742 = vmatpush1.msra.mxu0 0.0
    %743 = vmatprep.subr.mxu0 0.0
    %744 = vmatpush1.msra.mxu0 0.0
    %745 = vmatprep.subr.mxu0 0.0
    %746 = vmatpush1.msra.mxu0 0.0
    %747 = vmatprep.subr.mxu0 0.0
    %748 = vmatpush1.msra.mxu0 0.0
    %749 = vmatprep.subr.mxu0 0.0
    %750 = vmatpush1.msra.mxu0 0.0
    %751 = vmatprep.subr.mxu0 0.0
    %752 = vmatpush1.msra.mxu0 0.0
    %753 = vmatprep.mubr.f32.mxu0 0.0
    %754 = vmatmul.mubr.f32.gmra.mrb[0].mxu0 %v687
    %v755 = vpop.f32.mrb[0].mxu0
    %v756 = vadd.f32 0.0, %v755
    %v757 = vpop.f32.mrb[0].mxu0
    %758 = vdwg.mxu0
    %v759 = vadd.f32 %v165, %v756
    %v760 = vxor.u32 %v759, 2147483648
    %v761 = vmul.f32 %v760, 1.442695
    %v762 = vpow.pop %v761
    %v763 = vadd.f32 %v762, 1.0
    %v764 = vrcp.pop %v763
    %v765 = vmul.f32 1.0, %v764
    %v766 = vtanh.pop %v759
    %768 = vrot.lane.b32.xlu0 %v678, 32
    %v769 = vpop.permute.xlu0 %768
    %v771 = vmul.f32 %v765, %v769
    %773 = vrot.lane.b32.xlu0 %v766, 64
    %v774 = vpop.permute.xlu0 %773
    %v776 = vmul.f32 %v765, %v774
    %778 = vrot.lane.b32.xlu0 %v776, 32
    %v779 = vpop.permute.xlu0 %778
    %v781 = vadd.f32 %v771, %v779
    %v782 = vtanh.pop %v781
    %784 = vrot.lane.b32.xlu0 %v782, 64
    %v785 = vpop.permute.xlu0 %784
    %v787 = vmul.f32 %v765, %v785
    %vm788 = vcmp.gt.s32.totalorder %v36, 4
    %v789 = vsel %vm788, 1, 0
    %790 = vset.pattern.permute.xlu0 0
    %791 = vperm.xlu0 %790, %v789
    %v792 = vpop.permute.xlu0 %791
    %vm793 = vcmp.eq.s32.totalorder %v792, 1
    %794 = vrot.lane.b32.xlu0 %v672, 96
    %v795 = vpop.permute.xlu0 %794
    %v797 = vsel %vm793, %v787, %v795
    %v798 = vsel %vm793, %v781, %v769
    %v799 = vcvt.s32.f32 %v789
    %801 = vset.pattern.permute.xlu0 0
    %802 = vperm.xlu0 %801, %v799
    %v803 = vpop.permute.xlu0 %802
    %v805 = vmul.f32 %v803, %v787
    %807 = vrot.lane.b32.xlu0 %v797, 32
    %v808 = vpop.permute.xlu0 %807
    %v809 = vsel %vm168, %v808, 0
    %811 = vmatprep.subr.mxu0 0.0
    %812 = vmatpush1.msra.mxu0 %v45
    %813 = vmatprep.subr.mxu0 0.0
    %814 = vmatpush1.msra.mxu0 %v46
    %815 = vmatprep.subr.mxu0 0.0
    %816 = vmatpush1.msra.mxu0 %v47
    %817 = vmatprep.subr.mxu0 0.0
    %818 = vmatpush1.msra.mxu0 %v48
    %819 = vmatprep.subr.mxu0 0.0
    %820 = vmatpush1.msra.mxu0 0.0
    %821 = vmatprep.subr.mxu0 0.0
    %822 = vmatpush1.msra.mxu0 0.0
    %823 = vmatprep.subr.mxu0 0.0
    %824 = vmatpush1.msra.mxu0 0.0
    %825 = vmatprep.subr.mxu0 0.0
    %826 = vmatpush1.msra.mxu0 0.0
    %827 = vmatprep.subr.mxu0 0.0
    %828 = vmatpush1.msra.mxu0 0.0
    %829 = vmatprep.subr.mxu0 0.0
    %830 = vmatpush1.msra.mxu0 0.0
    %831 = vmatprep.subr.mxu0 0.0
    %832 = vmatpush1.msra.mxu0 0.0
    %833 = vmatprep.subr.mxu0 0.0
    %834 = vmatpush1.msra.mxu0 0.0
    %835 = vmatprep.subr.mxu0 0.0
    %836 = vmatpush1.msra.mxu0 0.0
    %837 = vmatprep.subr.mxu0 0.0
    %838 = vmatpush1.msra.mxu0 0.0
    %839 = vmatprep.subr.mxu0 0.0
    %840 = vmatpush1.msra.mxu0 0.0
    %841 = vmatprep.subr.mxu0 0.0
    %842 = vmatpush1.msra.mxu0 0.0
    %843 = vmatprep.subr.mxu0 0.0
    %844 = vmatpush1.msra.mxu0 0.0
    %845 = vmatprep.subr.mxu0 0.0
    %846 = vmatpush1.msra.mxu0 0.0
    %847 = vmatprep.subr.mxu0 0.0
    %848 = vmatpush1.msra.mxu0 0.0
    %849 = vmatprep.subr.mxu0 0.0
    %850 = vmatpush1.msra.mxu0 0.0
    %851 = vmatprep.subr.mxu0 0.0
    %852 = vmatpush1.msra.mxu0 0.0
    %853 = vmatprep.subr.mxu0 0.0
    %854 = vmatpush1.msra.mxu0 0.0
    %855 = vmatprep.subr.mxu0 0.0
    %856 = vmatpush1.msra.mxu0 0.0
    %857 = vmatprep.subr.mxu0 0.0
    %858 = vmatpush1.msra.mxu0 0.0
    %859 = vmatprep.subr.mxu0 0.0
    %860 = vmatpush1.msra.mxu0 0.0
    %861 = vmatprep.subr.mxu0 0.0
    %862 = vmatpush1.msra.mxu0 0.0
    %863 = vmatprep.subr.mxu0 0.0
    %864 = vmatpush1.msra.mxu0 0.0
    %865 = vmatprep.subr.mxu0 0.0
    %866 = vmatpush1.msra.mxu0 0.0
    %867 = vmatprep.subr.mxu0 0.0
    %868 = vmatpush1.msra.mxu0 0.0
    %869 = vmatprep.subr.mxu0 0.0
    %870 = vmatpush1.msra.mxu0 0.0
    %871 = vmatprep.subr.mxu0 0.0
    %872 = vmatpush1.msra.mxu0 0.0
    %873 = vmatprep.subr.mxu0 0.0
    %874 = vmatpush1.msra.mxu0 0.0
    %875 = vmatprep.mubr.f32.mxu0 0.0
    %876 = vmatmul.mubr.f32.gmra.mrb[0].mxu0 %v809
    %v877 = vpop.f32.mrb[0].mxu0
    %v878 = vadd.f32 0.0, %v877
    %v879 = vpop.f32.mrb[0].mxu0
    %880 = vdwg.mxu0
    %v882 = vrot.slane %v878, 6
    %v884 = vadd.f32 %v165, %v882
    %v885 = vxor.u32 %v884, 2147483648
    %v886 = vmul.f32 %v885, 1.442695
    %v887 = vpow.pop %v886
    %v888 = vadd.f32 %v887, 1.0
    %v889 = vrcp.pop %v888
    %v890 = vmul.f32 1.0, %v889
    %v891 = vtanh.pop %v884
    %v893 = vrot.slane %v798, 6
    %v895 = vmul.f32 %v890, %v893
    %897 = vrot.lane.b32.xlu0 %v891, 64
    %v898 = vpop.permute.xlu0 %897
    %v900 = vmul.f32 %v890, %v898
    %902 = vrot.lane.b32.xlu0 %v900, 32
    %v903 = vpop.permute.xlu0 %902
    %v905 = vadd.f32 %v895, %v903
    %v906 = vtanh.pop %v905
    %908 = vrot.lane.b32.xlu0 %v906, 64
    %v909 = vpop.permute.xlu0 %908
    %v911 = vmul.f32 %v890, %v909
    %vm912 = vcmp.gt.s32.totalorder %v36, 5
    %v913 = vsel %vm912, 1, 0
    %914 = vset.pattern.permute.xlu0 0
    %915 = vperm.xlu0 %914, %v913
    %v916 = vpop.permute.xlu0 %915
    %vm917 = vcmp.eq.s32.totalorder %v916, 1
    %v919 = vrot.slane %v911, 2
    %920 = vrot.lane.b32.xlu0 %v919, 32
    %v921 = vpop.permute.xlu0 %920
    %v924 = vsel %vm917, %v921, %v808
    %v926 = vrot.slane %v905, 2
    %927 = vrot.lane.b32.xlu0 %v926, 96
    %v928 = vpop.permute.xlu0 %927
    %930 = vrot.lane.b32.xlu0 %v798, 96
    %v931 = vpop.permute.xlu0 %930
    %v933 = vsel %vm917, %v928, %v931
    %v934 = vcvt.s32.f32 %v913
    %936 = vset.pattern.permute.xlu0 0
    %937 = vperm.xlu0 %936, %v934
    %v938 = vpop.permute.xlu0 %937
    %v940 = vmul.f32 %v938, %v921
    %v942 = vsel %vm168, %v924, 0
    %944 = vmatprep.subr.mxu0 0.0
    %945 = vmatpush1.msra.mxu0 %v45
    %946 = vmatprep.subr.mxu0 0.0
    %947 = vmatpush1.msra.mxu0 %v46
    %948 = vmatprep.subr.mxu0 0.0
    %949 = vmatpush1.msra.mxu0 %v47
    %950 = vmatprep.subr.mxu0 0.0
    %951 = vmatpush1.msra.mxu0 %v48
    %952 = vmatprep.subr.mxu0 0.0
    %953 = vmatpush1.msra.mxu0 0.0
    %954 = vmatprep.subr.mxu0 0.0
    %955 = vmatpush1.msra.mxu0 0.0
    %956 = vmatprep.subr.mxu0 0.0
    %957 = vmatpush1.msra.mxu0 0.0
    %958 = vmatprep.subr.mxu0 0.0
    %959 = vmatpush1.msra.mxu0 0.0
    %960 = vmatprep.subr.mxu0 0.0
    %961 = vmatpush1.msra.mxu0 0.0
    %962 = vmatprep.subr.mxu0 0.0
    %963 = vmatpush1.msra.mxu0 0.0
    %964 = vmatprep.subr.mxu0 0.0
    %965 = vmatpush1.msra.mxu0 0.0
    %966 = vmatprep.subr.mxu0 0.0
    %967 = vmatpush1.msra.mxu0 0.0
    %968 = vmatprep.subr.mxu0 0.0
    %969 = vmatpush1.msra.mxu0 0.0
    %970 = vmatprep.subr.mxu0 0.0
    %971 = vmatpush1.msra.mxu0 0.0
    %972 = vmatprep.subr.mxu0 0.0
    %973 = vmatpush1.msra.mxu0 0.0
    %974 = vmatprep.subr.mxu0 0.0
    %975 = vmatpush1.msra.mxu0 0.0
    %976 = vmatprep.subr.mxu0 0.0
    %977 = vmatpush1.msra.mxu0 0.0
    %978 = vmatprep.subr.mxu0 0.0
    %979 = vmatpush1.msra.mxu0 0.0
    %980 = vmatprep.subr.mxu0 0.0
    %981 = vmatpush1.msra.mxu0 0.0
    %982 = vmatprep.subr.mxu0 0.0
    %983 = vmatpush1.msra.mxu0 0.0
    %984 = vmatprep.subr.mxu0 0.0
    %985 = vmatpush1.msra.mxu0 0.0
    %986 = vmatprep.subr.mxu0 0.0
    %987 = vmatpush1.msra.mxu0 0.0
    %988 = vmatprep.subr.mxu0 0.0
    %989 = vmatpush1.msra.mxu0 0.0
    %990 = vmatprep.subr.mxu0 0.0
    %991 = vmatpush1.msra.mxu0 0.0
    %992 = vmatprep.subr.mxu0 0.0
    %993 = vmatpush1.msra.mxu0 0.0
    %994 = vmatprep.subr.mxu0 0.0
    %995 = vmatpush1.msra.mxu0 0.0
    %996 = vmatprep.subr.mxu0 0.0
    %997 = vmatpush1.msra.mxu0 0.0
    %998 = vmatprep.subr.mxu0 0.0
    %999 = vmatpush1.msra.mxu0 0.0
    %1000 = vmatprep.subr.mxu0 0.0
    %1001 = vmatpush1.msra.mxu0 0.0
    %1002 = vmatprep.subr.mxu0 0.0
    %1003 = vmatpush1.msra.mxu0 0.0
    %1004 = vmatprep.subr.mxu0 0.0
    %1005 = vmatpush1.msra.mxu0 0.0
    %1006 = vmatprep.subr.mxu0 0.0
    %1007 = vmatpush1.msra.mxu0 0.0
    %1008 = vmatprep.mubr.f32.mxu0 0.0
    %1009 = vmatmul.mubr.f32.gmra.mrb[0].mxu0 %v942
    %v1010 = vpop.f32.mrb[0].mxu0
    %v1011 = vadd.f32 0.0, %v1010
    %v1012 = vpop.f32.mrb[0].mxu0
    %1013 = vdwg.mxu0
    %v1015 = vrot.slane %v1011, 4
    %v1017 = vadd.f32 %v165, %v1015
    %v1018 = vxor.u32 %v1017, 2147483648
    %v1019 = vmul.f32 %v1018, 1.442695
    %v1020 = vpow.pop %v1019
    %v1021 = vadd.f32 %v1020, 1.0
    %v1022 = vrcp.pop %v1021
    %v1023 = vmul.f32 1.0, %v1022
    %v1024 = vtanh.pop %v1017
    %v1026 = vrot.slane %v933, 4
    %1027 = vrot.lane.b32.xlu0 %v1026, 32
    %v1028 = vpop.permute.xlu0 %1027
    %v1030 = vmul.f32 %v1023, %v1028
    %1032 = vrot.lane.b32.xlu0 %v1024, 64
    %v1033 = vpop.permute.xlu0 %1032
    %v1035 = vmul.f32 %v1023, %v1033
    %1037 = vrot.lane.b32.xlu0 %v1035, 32
    %v1038 = vpop.permute.xlu0 %1037
    %v1040 = vadd.f32 %v1030, %v1038
    %v1041 = vtanh.pop %v1040
    %1043 = vrot.lane.b32.xlu0 %v1041, 64
    %v1044 = vpop.permute.xlu0 %1043
    %v1046 = vmul.f32 %v1023, %v1044
    %vm1047 = vcmp.gt.s32.totalorder %v36, 6
    %v1048 = vsel %vm1047, 1, 0
    %1049 = vset.pattern.permute.xlu0 0
    %1050 = vperm.xlu0 %1049, %v1048
    %v1051 = vpop.permute.xlu0 %1050
    %vm1052 = vcmp.eq.s32.totalorder %v1051, 1
    %v1054 = vrot.slane %v1046, 4
    %1055 = vrot.lane.b32.xlu0 %v1054, 32
    %v1056 = vpop.permute.xlu0 %1055
    %v1058 = vsel %vm1052, %v1056, %v924
    %v1060 = vrot.slane %v1040, 4
    %1061 = vrot.lane.b32.xlu0 %v1060, 96
    %v1062 = vpop.permute.xlu0 %1061
    %v1064 = vsel %vm1052, %v1062, %v933
    %v1065 = vcvt.s32.f32 %v1048
    %1067 = vset.pattern.permute.xlu0 0
    %1068 = vperm.xlu0 %1067, %v1065
    %v1069 = vpop.permute.xlu0 %1068
    %v1071 = vmul.f32 %v1069, %v1056
    %v1073 = vsel %vm168, %v1058, 0
    %1075 = vmatprep.subr.mxu0 0.0
    %1076 = vmatpush1.msra.mxu0 %v45
    %1077 = vmatprep.subr.mxu0 0.0
    %1078 = vmatpush1.msra.mxu0 %v46
    %1079 = vmatprep.subr.mxu0 0.0
    %1080 = vmatpush1.msra.mxu0 %v47
    %1081 = vmatprep.subr.mxu0 0.0
    %1082 = vmatpush1.msra.mxu0 %v48
    %1083 = vmatprep.subr.mxu0 0.0
    %1084 = vmatpush1.msra.mxu0 0.0
    %1085 = vmatprep.subr.mxu0 0.0
    %1086 = vmatpush1.msra.mxu0 0.0
    %1087 = vmatprep.subr.mxu0 0.0
    %1088 = vmatpush1.msra.mxu0 0.0
    %1089 = vmatprep.subr.mxu0 0.0
    %1090 = vmatpush1.msra.mxu0 0.0
    %1091 = vmatprep.subr.mxu0 0.0
    %1092 = vmatpush1.msra.mxu0 0.0
    %1093 = vmatprep.subr.mxu0 0.0
    %1094 = vmatpush1.msra.mxu0 0.0
    %1095 = vmatprep.subr.mxu0 0.0
    %1096 = vmatpush1.msra.mxu0 0.0
    %1097 = vmatprep.subr.mxu0 0.0
    %1098 = vmatpush1.msra.mxu0 0.0
    %1099 = vmatprep.subr.mxu0 0.0
    %1100 = vmatpush1.msra.mxu0 0.0
    %1101 = vmatprep.subr.mxu0 0.0
    %1102 = vmatpush1.msra.mxu0 0.0
    %1103 = vmatprep.subr.mxu0 0.0
    %1104 = vmatpush1.msra.mxu0 0.0
    %1105 = vmatprep.subr.mxu0 0.0
    %1106 = vmatpush1.msra.mxu0 0.0
    %1107 = vmatprep.subr.mxu0 0.0
    %1108 = vmatpush1.msra.mxu0 0.0
    %1109 = vmatprep.subr.mxu0 0.0
    %1110 = vmatpush1.msra.mxu0 0.0
    %1111 = vmatprep.subr.mxu0 0.0
    %1112 = vmatpush1.msra.mxu0 0.0
    %1113 = vmatprep.subr.mxu0 0.0
    %1114 = vmatpush1.msra.mxu0 0.0
    %1115 = vmatprep.subr.mxu0 0.0
    %1116 = vmatpush1.msra.mxu0 0.0
    %1117 = vmatprep.subr.mxu0 0.0
    %1118 = vmatpush1.msra.mxu0 0.0
    %1119 = vmatprep.subr.mxu0 0.0
    %1120 = vmatpush1.msra.mxu0 0.0
    %1121 = vmatprep.subr.mxu0 0.0
    %1122 = vmatpush1.msra.mxu0 0.0
    %1123 = vmatprep.subr.mxu0 0.0
    %1124 = vmatpush1.msra.mxu0 0.0
    %1125 = vmatprep.subr.mxu0 0.0
    %1126 = vmatpush1.msra.mxu0 0.0
    %1127 = vmatprep.subr.mxu0 0.0
    %1128 = vmatpush1.msra.mxu0 0.0
    %1129 = vmatprep.subr.mxu0 0.0
    %1130 = vmatpush1.msra.mxu0 0.0
    %1131 = vmatprep.subr.mxu0 0.0
    %1132 = vmatpush1.msra.mxu0 0.0
    %1133 = vmatprep.subr.mxu0 0.0
    %1134 = vmatpush1.msra.mxu0 0.0
    %1135 = vmatprep.subr.mxu0 0.0
    %1136 = vmatpush1.msra.mxu0 0.0
    %1137 = vmatprep.subr.mxu0 0.0
    %1138 = vmatpush1.msra.mxu0 0.0
    %1139 = vmatprep.mubr.f32.mxu0 0.0
    %1140 = vmatmul.mubr.f32.gmra.mrb[0].mxu0 %v1073
    %v1141 = vpop.f32.mrb[0].mxu0
    %v1142 = vadd.f32 0.0, %v1141
    %v1143 = vpop.f32.mrb[0].mxu0
    %1144 = vdwg.mxu0
    %v1146 = vrot.slane %v1142, 2
    %v1148 = vadd.f32 %v165, %v1146
    %v1149 = vxor.u32 %v1148, 2147483648
    %v1150 = vmul.f32 %v1149, 1.442695
    %v1151 = vpow.pop %v1150
    %v1152 = vadd.f32 %v1151, 1.0
    %v1153 = vrcp.pop %v1152
    %v1154 = vmul.f32 1.0, %v1153
    %v1155 = vtanh.pop %v1148
    %v1157 = vrot.slane %v1064, 2
    %1158 = vrot.lane.b32.xlu0 %v1157, 32
    %v1159 = vpop.permute.xlu0 %1158
    %v1161 = vmul.f32 %v1154, %v1159
    %1163 = vrot.lane.b32.xlu0 %v1155, 64
    %v1164 = vpop.permute.xlu0 %1163
    %v1166 = vmul.f32 %v1154, %v1164
    %1168 = vrot.lane.b32.xlu0 %v1166, 32
    %v1169 = vpop.permute.xlu0 %1168
    %v1171 = vadd.f32 %v1161, %v1169
    %v1172 = vtanh.pop %v1171
    %1174 = vrot.lane.b32.xlu0 %v1172, 64
    %v1175 = vpop.permute.xlu0 %1174
    %v1177 = vmul.f32 %v1154, %v1175
    %vm1178 = vcmp.gt.s32.totalorder %v36, 7
    %v1179 = vsel %vm1178, 1, 0
    %1180 = vset.pattern.permute.xlu0 0
    %1181 = vperm.xlu0 %1180, %v1179
    %v1182 = vpop.permute.xlu0 %1181
    %vm1183 = vcmp.eq.s32.totalorder %v1182, 1
    %v1185 = vrot.slane %v1177, 6
    %1186 = vrot.lane.b32.xlu0 %v1185, 32
    %v1187 = vpop.permute.xlu0 %1186
    %v1189 = vsel %vm1183, %v1187, %v1058
    %v1191 = vrot.slane %v1171, 6
    %1192 = vrot.lane.b32.xlu0 %v1191, 96
    %v1193 = vpop.permute.xlu0 %1192
    %v1195 = vsel %vm1183, %v1193, %v1064
    %v1196 = vcvt.s32.f32 %v1179
    %1198 = vset.pattern.permute.xlu0 0
    %1199 = vperm.xlu0 %1198, %v1196
    %v1200 = vpop.permute.xlu0 %1199
    %v1202 = vmul.f32 %v1200, %v1187
    %1204 = vrot.lane.b32.xlu0 %v288, 32
    %v1205 = vpop.permute.xlu0 %1204
    %1208 = vrot.lane.b32.xlu0 %v65, 32
    %v1209 = vpop.permute.xlu0 %1208
    %v1211 = vsel %vm168, %v1205, %v1209
    %v1212 = vlaneseq
    %v1213 = vshrl.u32 %v1212, 7
    %v1214 = vsub.s32 0, %v1213
    %v1215 = vrot.slane %v62, %v1214
    %v1217 = vsel %vm86, %v1211, 0
    %1219 = vmatprep.subr.mxu0 0.0
    %1220 = vmatpush1.msra.mxu0 %v49
    %1221 = vmatprep.subr.mxu0 0.0
    %1222 = vmatpush1.msra.mxu0 %v50
    %1223 = vmatprep.subr.mxu0 0.0
    %1224 = vmatpush1.msra.mxu0 %v51
    %1225 = vmatprep.subr.mxu0 0.0
    %1226 = vmatpush1.msra.mxu0 %v52
    %1227 = vmatprep.subr.mxu0 0.0
    %1228 = vmatpush1.msra.mxu0 %v53
    %1229 = vmatprep.subr.mxu0 0.0
    %1230 = vmatpush1.msra.mxu0 %v54
    %1231 = vmatprep.subr.mxu0 0.0
    %1232 = vmatpush1.msra.mxu0 %v55
    %1233 = vmatprep.subr.mxu0 0.0
    %1234 = vmatpush1.msra.mxu0 %v56
    %1235 = vmatprep.subr.mxu0 0.0
    %1236 = vmatpush1.msra.mxu0 0.0
    %1237 = vmatprep.subr.mxu0 0.0
    %1238 = vmatpush1.msra.mxu0 0.0
    %1239 = vmatprep.subr.mxu0 0.0
    %1240 = vmatpush1.msra.mxu0 0.0
    %1241 = vmatprep.subr.mxu0 0.0
    %1242 = vmatpush1.msra.mxu0 0.0
    %1243 = vmatprep.subr.mxu0 0.0
    %1244 = vmatpush1.msra.mxu0 0.0
    %1245 = vmatprep.subr.mxu0 0.0
    %1246 = vmatpush1.msra.mxu0 0.0
    %1247 = vmatprep.subr.mxu0 0.0
    %1248 = vmatpush1.msra.mxu0 0.0
    %1249 = vmatprep.subr.mxu0 0.0
    %1250 = vmatpush1.msra.mxu0 0.0
    %1251 = vmatprep.subr.mxu0 0.0
    %1252 = vmatpush1.msra.mxu0 0.0
    %1253 = vmatprep.subr.mxu0 0.0
    %1254 = vmatpush1.msra.mxu0 0.0
    %1255 = vmatprep.subr.mxu0 0.0
    %1256 = vmatpush1.msra.mxu0 0.0
    %1257 = vmatprep.subr.mxu0 0.0
    %1258 = vmatpush1.msra.mxu0 0.0
    %1259 = vmatprep.subr.mxu0 0.0
    %1260 = vmatpush1.msra.mxu0 0.0
    %1261 = vmatprep.subr.mxu0 0.0
    %1262 = vmatpush1.msra.mxu0 0.0
    %1263 = vmatprep.subr.mxu0 0.0
    %1264 = vmatpush1.msra.mxu0 0.0
    %1265 = vmatprep.subr.mxu0 0.0
    %1266 = vmatpush1.msra.mxu0 0.0
    %1267 = vmatprep.subr.mxu0 0.0
    %1268 = vmatpush1.msra.mxu0 0.0
    %1269 = vmatprep.subr.mxu0 0.0
    %1270 = vmatpush1.msra.mxu0 0.0
    %1271 = vmatprep.subr.mxu0 0.0
    %1272 = vmatpush1.msra.mxu0 0.0
    %1273 = vmatprep.subr.mxu0 0.0
    %1274 = vmatpush1.msra.mxu0 0.0
    %1275 = vmatprep.subr.mxu0 0.0
    %1276 = vmatpush1.msra.mxu0 0.0
    %1277 = vmatprep.subr.mxu0 0.0
    %1278 = vmatpush1.msra.mxu0 0.0
    %1279 = vmatprep.subr.mxu0 0.0
    %1280 = vmatpush1.msra.mxu0 0.0
    %1281 = vmatprep.subr.mxu0 0.0
    %1282 = vmatpush1.msra.mxu0 0.0
    %1283 = vmatprep.mubr.f32.mxu0 0.0
    %1284 = vmatmul.mubr.f32.gmra.mrb[0].mxu0 %v1217
    %v1285 = vpop.f32.mrb[0].mxu0
    %v1286 = vadd.f32 %v1215, %v1285
    %v1287 = vpop.f32.mrb[0].mxu0
    %1288 = vdwg.mxu0
    %v1289 = vxor.u32 %v1286, 2147483648
    %v1290 = vmul.f32 %v1289, 1.442695
    %v1291 = vpow.pop %v1290
    %v1292 = vadd.f32 %v1291, 1.0
    %v1293 = vrcp.pop %v1292
    %v1294 = vmul.f32 1.0, %v1293
    %v1295 = vtanh.pop %v1286
    %1297 = vrot.lane.b32.xlu0 %v67, 32
    %v1298 = vpop.permute.xlu0 %1297
    %v1300 = vmul.f32 %v1294, %v1298
    %1302 = vrot.lane.b32.xlu0 %v1295, 64
    %v1303 = vpop.permute.xlu0 %1302
    %v1305 = vmul.f32 %v1294, %v1303
    %1307 = vrot.lane.b32.xlu0 %v1305, 32
    %v1308 = vpop.permute.xlu0 %1307
    %v1310 = vadd.f32 %v1300, %v1308
    %v1311 = vtanh.pop %v1310
    %1313 = vrot.lane.b32.xlu0 %v1311, 64
    %v1314 = vpop.permute.xlu0 %1313
    %v1316 = vmul.f32 %v1294, %v1314
    %1317 = vrot.lane.b32.xlu0 %v65, 96
    %v1318 = vpop.permute.xlu0 %1317
    %v1320 = vsel %vm276, %v1316, %v1318
    %v1321 = vsel %vm276, %v1310, %v1298
    %v1322 = vmul.f32 %v286, %v1316
    %1324 = vrot.lane.b32.xlu0 %v1320, 64
    %v1325 = vpop.permute.xlu0 %1324
    %v1327 = vsel %vm168, %v423, %v1325
    %v1329 = vsel %vm86, %v1327, 0
    %1331 = vmatprep.subr.mxu0 0.0
    %1332 = vmatpush1.msra.mxu0 %v49
    %1333 = vmatprep.subr.mxu0 0.0
    %1334 = vmatpush1.msra.mxu0 %v50
    %1335 = vmatprep.subr.mxu0 0.0
    %1336 = vmatpush1.msra.mxu0 %v51
    %1337 = vmatprep.subr.mxu0 0.0
    %1338 = vmatpush1.msra.mxu0 %v52
    %1339 = vmatprep.subr.mxu0 0.0
    %1340 = vmatpush1.msra.mxu0 %v53
    %1341 = vmatprep.subr.mxu0 0.0
    %1342 = vmatpush1.msra.mxu0 %v54
    %1343 = vmatprep.subr.mxu0 0.0
    %1344 = vmatpush1.msra.mxu0 %v55
    %1345 = vmatprep.subr.mxu0 0.0
    %1346 = vmatpush1.msra.mxu0 %v56
    %1347 = vmatprep.subr.mxu0 0.0
    %1348 = vmatpush1.msra.mxu0 0.0
    %1349 = vmatprep.subr.mxu0 0.0
    %1350 = vmatpush1.msra.mxu0 0.0
    %1351 = vmatprep.subr.mxu0 0.0
    %1352 = vmatpush1.msra.mxu0 0.0
    %1353 = vmatprep.subr.mxu0 0.0
    %1354 = vmatpush1.msra.mxu0 0.0
    %1355 = vmatprep.subr.mxu0 0.0
    %1356 = vmatpush1.msra.mxu0 0.0
    %1357 = vmatprep.subr.mxu0 0.0
    %1358 = vmatpush1.msra.mxu0 0.0
    %1359 = vmatprep.subr.mxu0 0.0
    %1360 = vmatpush1.msra.mxu0 0.0
    %1361 = vmatprep.subr.mxu0 0.0
    %1362 = vmatpush1.msra.mxu0 0.0
    %1363 = vmatprep.subr.mxu0 0.0
    %1364 = vmatpush1.msra.mxu0 0.0
    %1365 = vmatprep.subr.mxu0 0.0
    %1366 = vmatpush1.msra.mxu0 0.0
    %1367 = vmatprep.subr.mxu0 0.0
    %1368 = vmatpush1.msra.mxu0 0.0
    %1369 = vmatprep.subr.mxu0 0.0
    %1370 = vmatpush1.msra.mxu0 0.0
    %1371 = vmatprep.subr.mxu0 0.0
    %1372 = vmatpush1.msra.mxu0 0.0
    %1373 = vmatprep.subr.mxu0 0.0
    %1374 = vmatpush1.msra.mxu0 0.0
    %1375 = vmatprep.subr.mxu0 0.0
    %1376 = vmatpush1.msra.mxu0 0.0
    %1377 = vmatprep.subr.mxu0 0.0
    %1378 = vmatpush1.msra.mxu0 0.0
    %1379 = vmatprep.subr.mxu0 0.0
    %1380 = vmatpush1.msra.mxu0 0.0
    %1381 = vmatprep.subr.mxu0 0.0
    %1382 = vmatpush1.msra.mxu0 0.0
    %1383 = vmatprep.subr.mxu0 0.0
    %1384 = vmatpush1.msra.mxu0 0.0
    %1385 = vmatprep.subr.mxu0 0.0
    %1386 = vmatpush1.msra.mxu0 0.0
    %1387 = vmatprep.subr.mxu0 0.0
    %1388 = vmatpush1.msra.mxu0 0.0
    %1389 = vmatprep.subr.mxu0 0.0
    %1390 = vmatpush1.msra.mxu0 0.0
    %1391 = vmatprep.subr.mxu0 0.0
    %1392 = vmatpush1.msra.mxu0 0.0
    %1393 = vmatprep.subr.mxu0 0.0
    %1394 = vmatpush1.msra.mxu0 0.0
    %1395 = vmatprep.mubr.f32.mxu0 0.0
    %1396 = vmatmul.mubr.f32.gmra.mrb[0].mxu0 %v1329
    %v1397 = vpop.f32.mrb[0].mxu0
    %v1398 = vadd.f32 %v1215, %v1397
    %v1399 = vpop.f32.mrb[0].mxu0
    %1400 = vdwg.mxu0
    %v1401 = vxor.u32 %v1398, 2147483648
    %v1402 = vmul.f32 %v1401, 1.442695
    %v1403 = vpow.pop %v1402
    %v1404 = vadd.f32 %v1403, 1.0
    %v1405 = vrcp.pop %v1404
    %v1406 = vmul.f32 1.0, %v1405
    %v1407 = vtanh.pop %v1398
    %v1408 = vmul.f32 %v1406, %v1321
    %1410 = vrot.lane.b32.xlu0 %v1407, 64
    %v1411 = vpop.permute.xlu0 %1410
    %v1413 = vmul.f32 %v1406, %v1411
    %1415 = vrot.lane.b32.xlu0 %v1413, 32
    %v1416 = vpop.permute.xlu0 %1415
    %v1418 = vadd.f32 %v1408, %v1416
    %v1419 = vtanh.pop %v1418
    %1421 = vrot.lane.b32.xlu0 %v1419, 64
    %v1422 = vpop.permute.xlu0 %1421
    %v1424 = vmul.f32 %v1406, %v1422
    %v1425 = vsel %vm400, %v1424, %v1320
    %v1426 = vsel %vm400, %v1418, %v1321
    %v1427 = vmul.f32 %v421, %v1424
    %1429 = vrot.lane.b32.xlu0 %v1425, 64
    %v1430 = vpop.permute.xlu0 %1429
    %v1432 = vsel %vm168, %v554, %v1430
    %v1434 = vsel %vm86, %v1432, 0
    %1436 = vmatprep.subr.mxu0 0.0
    %1437 = vmatpush1.msra.mxu0 %v49
    %1438 = vmatprep.subr.mxu0 0.0
    %1439 = vmatpush1.msra.mxu0 %v50
    %1440 = vmatprep.subr.mxu0 0.0
    %1441 = vmatpush1.msra.mxu0 %v51
    %1442 = vmatprep.subr.mxu0 0.0
    %1443 = vmatpush1.msra.mxu0 %v52
    %1444 = vmatprep.subr.mxu0 0.0
    %1445 = vmatpush1.msra.mxu0 %v53
    %1446 = vmatprep.subr.mxu0 0.0
    %1447 = vmatpush1.msra.mxu0 %v54
    %1448 = vmatprep.subr.mxu0 0.0
    %1449 = vmatpush1.msra.mxu0 %v55
    %1450 = vmatprep.subr.mxu0 0.0
    %1451 = vmatpush1.msra.mxu0 %v56
    %1452 = vmatprep.subr.mxu0 0.0
    %1453 = vmatpush1.msra.mxu0 0.0
    %1454 = vmatprep.subr.mxu0 0.0
    %1455 = vmatpush1.msra.mxu0 0.0
    %1456 = vmatprep.subr.mxu0 0.0
    %1457 = vmatpush1.msra.mxu0 0.0
    %1458 = vmatprep.subr.mxu0 0.0
    %1459 = vmatpush1.msra.mxu0 0.0
    %1460 = vmatprep.subr.mxu0 0.0
    %1461 = vmatpush1.msra.mxu0 0.0
    %1462 = vmatprep.subr.mxu0 0.0
    %1463 = vmatpush1.msra.mxu0 0.0
    %1464 = vmatprep.subr.mxu0 0.0
    %1465 = vmatpush1.msra.mxu0 0.0
    %1466 = vmatprep.subr.mxu0 0.0
    %1467 = vmatpush1.msra.mxu0 0.0
    %1468 = vmatprep.subr.mxu0 0.0
    %1469 = vmatpush1.msra.mxu0 0.0
    %1470 = vmatprep.subr.mxu0 0.0
    %1471 = vmatpush1.msra.mxu0 0.0
    %1472 = vmatprep.subr.mxu0 0.0
    %1473 = vmatpush1.msra.mxu0 0.0
    %1474 = vmatprep.subr.mxu0 0.0
    %1475 = vmatpush1.msra.mxu0 0.0
    %1476 = vmatprep.subr.mxu0 0.0
    %1477 = vmatpush1.msra.mxu0 0.0
    %1478 = vmatprep.subr.mxu0 0.0
    %1479 = vmatpush1.msra.mxu0 0.0
    %1480 = vmatprep.subr.mxu0 0.0
    %1481 = vmatpush1.msra.mxu0 0.0
    %1482 = vmatprep.subr.mxu0 0.0
    %1483 = vmatpush1.msra.mxu0 0.0
    %1484 = vmatprep.subr.mxu0 0.0
    %1485 = vmatpush1.msra.mxu0 0.0
    %1486 = vmatprep.subr.mxu0 0.0
    %1487 = vmatpush1.msra.mxu0 0.0
    %1488 = vmatprep.subr.mxu0 0.0
    %1489 = vmatpush1.msra.mxu0 0.0
    %1490 = vmatprep.subr.mxu0 0.0
    %1491 = vmatpush1.msra.mxu0 0.0
    %1492 = vmatprep.subr.mxu0 0.0
    %1493 = vmatpush1.msra.mxu0 0.0
    %1494 = vmatprep.subr.mxu0 0.0
    %1495 = vmatpush1.msra.mxu0 0.0
    %1496 = vmatprep.subr.mxu0 0.0
    %1497 = vmatpush1.msra.mxu0 0.0
    %1498 = vmatprep.subr.mxu0 0.0
    %1499 = vmatpush1.msra.mxu0 0.0
    %1500 = vmatprep.mubr.f32.mxu0 0.0
    %1501 = vmatmul.mubr.f32.gmra.mrb[0].mxu0 %v1434
    %v1502 = vpop.f32.mrb[0].mxu0
    %v1503 = vadd.f32 %v1215, %v1502
    %v1504 = vpop.f32.mrb[0].mxu0
    %1505 = vdwg.mxu0
    %v1506 = vxor.u32 %v1503, 2147483648
    %v1507 = vmul.f32 %v1506, 1.442695
    %v1508 = vpow.pop %v1507
    %v1509 = vadd.f32 %v1508, 1.0
    %v1510 = vrcp.pop %v1509
    %v1511 = vmul.f32 1.0, %v1510
    %v1512 = vtanh.pop %v1503
    %v1513 = vmul.f32 %v1511, %v1426
    %1515 = vrot.lane.b32.xlu0 %v1512, 64
    %v1516 = vpop.permute.xlu0 %1515
    %v1518 = vmul.f32 %v1511, %v1516
    %1520 = vrot.lane.b32.xlu0 %v1518, 32
    %v1521 = vpop.permute.xlu0 %1520
    %v1523 = vadd.f32 %v1513, %v1521
    %v1524 = vtanh.pop %v1523
    %1526 = vrot.lane.b32.xlu0 %v1524, 64
    %v1527 = vpop.permute.xlu0 %1526
    %v1529 = vmul.f32 %v1511, %v1527
    %v1530 = vsel %vm535, %v1529, %v1425
    %v1531 = vsel %vm535, %v1523, %v1426
    %v1532 = vmul.f32 %v552, %v1529
    %1534 = vrot.lane.b32.xlu0 %v1530, 64
    %v1535 = vpop.permute.xlu0 %1534
    %v1537 = vsel %vm168, %v685, %v1535
    %v1539 = vsel %vm86, %v1537, 0
    %1541 = vmatprep.subr.mxu0 0.0
    %1542 = vmatpush1.msra.mxu0 %v49
    %1543 = vmatprep.subr.mxu0 0.0
    %1544 = vmatpush1.msra.mxu0 %v50
    %1545 = vmatprep.subr.mxu0 0.0
    %1546 = vmatpush1.msra.mxu0 %v51
    %1547 = vmatprep.subr.mxu0 0.0
    %1548 = vmatpush1.msra.mxu0 %v52
    %1549 = vmatprep.subr.mxu0 0.0
    %1550 = vmatpush1.msra.mxu0 %v53
    %1551 = vmatprep.subr.mxu0 0.0
    %1552 = vmatpush1.msra.mxu0 %v54
    %1553 = vmatprep.subr.mxu0 0.0
    %1554 = vmatpush1.msra.mxu0 %v55
    %1555 = vmatprep.subr.mxu0 0.0
    %1556 = vmatpush1.msra.mxu0 %v56
    %1557 = vmatprep.subr.mxu0 0.0
    %1558 = vmatpush1.msra.mxu0 0.0
    %1559 = vmatprep.subr.mxu0 0.0
    %1560 = vmatpush1.msra.mxu0 0.0
    %1561 = vmatprep.subr.mxu0 0.0
    %1562 = vmatpush1.msra.mxu0 0.0
    %1563 = vmatprep.subr.mxu0 0.0
    %1564 = vmatpush1.msra.mxu0 0.0
    %1565 = vmatprep.subr.mxu0 0.0
    %1566 = vmatpush1.msra.mxu0 0.0
    %1567 = vmatprep.subr.mxu0 0.0
    %1568 = vmatpush1.msra.mxu0 0.0
    %1569 = vmatprep.subr.mxu0 0.0
    %1570 = vmatpush1.msra.mxu0 0.0
    %1571 = vmatprep.subr.mxu0 0.0
    %1572 = vmatpush1.msra.mxu0 0.0
    %1573 = vmatprep.subr.mxu0 0.0
    %1574 = vmatpush1.msra.mxu0 0.0
    %1575 = vmatprep.subr.mxu0 0.0
    %1576 = vmatpush1.msra.mxu0 0.0
    %1577 = vmatprep.subr.mxu0 0.0
    %1578 = vmatpush1.msra.mxu0 0.0
    %1579 = vmatprep.subr.mxu0 0.0
    %1580 = vmatpush1.msra.mxu0 0.0
    %1581 = vmatprep.subr.mxu0 0.0
    %1582 = vmatpush1.msra.mxu0 0.0
    %1583 = vmatprep.subr.mxu0 0.0
    %1584 = vmatpush1.msra.mxu0 0.0
    %1585 = vmatprep.subr.mxu0 0.0
    %1586 = vmatpush1.msra.mxu0 0.0
    %1587 = vmatprep.subr.mxu0 0.0
    %1588 = vmatpush1.msra.mxu0 0.0
    %1589 = vmatprep.subr.mxu0 0.0
    %1590 = vmatpush1.msra.mxu0 0.0
    %1591 = vmatprep.subr.mxu0 0.0
    %1592 = vmatpush1.msra.mxu0 0.0
    %1593 = vmatprep.subr.mxu0 0.0
    %1594 = vmatpush1.msra.mxu0 0.0
    %1595 = vmatprep.subr.mxu0 0.0
    %1596 = vmatpush1.msra.mxu0 0.0
    %1597 = vmatprep.subr.mxu0 0.0
    %1598 = vmatpush1.msra.mxu0 0.0
    %1599 = vmatprep.subr.mxu0 0.0
    %1600 = vmatpush1.msra.mxu0 0.0
    %1601 = vmatprep.subr.mxu0 0.0
    %1602 = vmatpush1.msra.mxu0 0.0
    %1603 = vmatprep.subr.mxu0 0.0
    %1604 = vmatpush1.msra.mxu0 0.0
    %1605 = vmatprep.mubr.f32.mxu0 0.0
    %1606 = vmatmul.mubr.f32.gmra.mrb[0].mxu0 %v1539
    %v1607 = vpop.f32.mrb[0].mxu0
    %v1608 = vadd.f32 %v1215, %v1607
    %v1609 = vpop.f32.mrb[0].mxu0
    %1610 = vdwg.mxu0
    %v1611 = vxor.u32 %v1608, 2147483648
    %v1612 = vmul.f32 %v1611, 1.442695
    %v1613 = vpow.pop %v1612
    %v1614 = vadd.f32 %v1613, 1.0
    %v1615 = vrcp.pop %v1614
    %v1616 = vmul.f32 1.0, %v1615
    %v1617 = vtanh.pop %v1608
    %v1618 = vmul.f32 %v1616, %v1531
    %1620 = vrot.lane.b32.xlu0 %v1617, 64
    %v1621 = vpop.permute.xlu0 %1620
    %v1623 = vmul.f32 %v1616, %v1621
    %1625 = vrot.lane.b32.xlu0 %v1623, 32
    %v1626 = vpop.permute.xlu0 %1625
    %v1628 = vadd.f32 %v1618, %v1626
    %v1629 = vtanh.pop %v1628
    %1631 = vrot.lane.b32.xlu0 %v1629, 64
    %v1632 = vpop.permute.xlu0 %1631
    %v1634 = vmul.f32 %v1616, %v1632
    %v1635 = vsel %vm666, %v1634, %v1530
    %v1636 = vsel %vm666, %v1628, %v1531
    %v1637 = vmul.f32 %v683, %v1634
    %1639 = vrot.lane.b32.xlu0 %v805, 32
    %v1640 = vpop.permute.xlu0 %1639
    %1643 = vrot.lane.b32.xlu0 %v1635, 64
    %v1644 = vpop.permute.xlu0 %1643
    %v1646 = vsel %vm168, %v1640, %v1644
    %v1648 = vsel %vm86, %v1646, 0
    %1650 = vmatprep.subr.mxu0 0.0
    %1651 = vmatpush1.msra.mxu0 %v49
    %1652 = vmatprep.subr.mxu0 0.0
    %1653 = vmatpush1.msra.mxu0 %v50
    %1654 = vmatprep.subr.mxu0 0.0
    %1655 = vmatpush1.msra.mxu0 %v51
    %1656 = vmatprep.subr.mxu0 0.0
    %1657 = vmatpush1.msra.mxu0 %v52
    %1658 = vmatprep.subr.mxu0 0.0
    %1659 = vmatpush1.msra.mxu0 %v53
    %1660 = vmatprep.subr.mxu0 0.0
    %1661 = vmatpush1.msra.mxu0 %v54
    %1662 = vmatprep.subr.mxu0 0.0
    %1663 = vmatpush1.msra.mxu0 %v55
    %1664 = vmatprep.subr.mxu0 0.0
    %1665 = vmatpush1.msra.mxu0 %v56
    %1666 = vmatprep.subr.mxu0 0.0
    %1667 = vmatpush1.msra.mxu0 0.0
    %1668 = vmatprep.subr.mxu0 0.0
    %1669 = vmatpush1.msra.mxu0 0.0
    %1670 = vmatprep.subr.mxu0 0.0
    %1671 = vmatpush1.msra.mxu0 0.0
    %1672 = vmatprep.subr.mxu0 0.0
    %1673 = vmatpush1.msra.mxu0 0.0
    %1674 = vmatprep.subr.mxu0 0.0
    %1675 = vmatpush1.msra.mxu0 0.0
    %1676 = vmatprep.subr.mxu0 0.0
    %1677 = vmatpush1.msra.mxu0 0.0
    %1678 = vmatprep.subr.mxu0 0.0
    %1679 = vmatpush1.msra.mxu0 0.0
    %1680 = vmatprep.subr.mxu0 0.0
    %1681 = vmatpush1.msra.mxu0 0.0
    %1682 = vmatprep.subr.mxu0 0.0
    %1683 = vmatpush1.msra.mxu0 0.0
    %1684 = vmatprep.subr.mxu0 0.0
    %1685 = vmatpush1.msra.mxu0 0.0
    %1686 = vmatprep.subr.mxu0 0.0
    %1687 = vmatpush1.msra.mxu0 0.0
    %1688 = vmatprep.subr.mxu0 0.0
    %1689 = vmatpush1.msra.mxu0 0.0
    %1690 = vmatprep.subr.mxu0 0.0
    %1691 = vmatpush1.msra.mxu0 0.0
    %1692 = vmatprep.subr.mxu0 0.0
    %1693 = vmatpush1.msra.mxu0 0.0
    %1694 = vmatprep.subr.mxu0 0.0
    %1695 = vmatpush1.msra.mxu0 0.0
    %1696 = vmatprep.subr.mxu0 0.0
    %1697 = vmatpush1.msra.mxu0 0.0
    %1698 = vmatprep.subr.mxu0 0.0
    %1699 = vmatpush1.msra.mxu0 0.0
    %1700 = vmatprep.subr.mxu0 0.0
    %1701 = vmatpush1.msra.mxu0 0.0
    %1702 = vmatprep.subr.mxu0 0.0
    %1703 = vmatpush1.msra.mxu0 0.0
    %1704 = vmatprep.subr.mxu0 0.0
    %1705 = vmatpush1.msra.mxu0 0.0
    %1706 = vmatprep.subr.mxu0 0.0
    %1707 = vmatpush1.msra.mxu0 0.0
    %1708 = vmatprep.subr.mxu0 0.0
    %1709 = vmatpush1.msra.mxu0 0.0
    %1710 = vmatprep.subr.mxu0 0.0
    %1711 = vmatpush1.msra.mxu0 0.0
    %1712 = vmatprep.subr.mxu0 0.0
    %1713 = vmatpush1.msra.mxu0 0.0
    %1714 = vmatprep.mubr.f32.mxu0 0.0
    %1715 = vmatmul.mubr.f32.gmra.mrb[0].mxu0 %v1648
    %v1716 = vpop.f32.mrb[0].mxu0
    %v1717 = vadd.f32 %v1215, %v1716
    %v1718 = vpop.f32.mrb[0].mxu0
    %1719 = vdwg.mxu0
    %v1720 = vxor.u32 %v1717, 2147483648
    %v1721 = vmul.f32 %v1720, 1.442695
    %v1722 = vpow.pop %v1721
    %v1723 = vadd.f32 %v1722, 1.0
    %v1724 = vrcp.pop %v1723
    %v1725 = vmul.f32 1.0, %v1724
    %v1726 = vtanh.pop %v1717
    %v1727 = vmul.f32 %v1725, %v1636
    %1729 = vrot.lane.b32.xlu0 %v1726, 64
    %v1730 = vpop.permute.xlu0 %1729
    %v1732 = vmul.f32 %v1725, %v1730
    %1734 = vrot.lane.b32.xlu0 %v1732, 32
    %v1735 = vpop.permute.xlu0 %1734
    %v1737 = vadd.f32 %v1727, %v1735
    %v1738 = vtanh.pop %v1737
    %1740 = vrot.lane.b32.xlu0 %v1738, 64
    %v1741 = vpop.permute.xlu0 %1740
    %v1743 = vmul.f32 %v1725, %v1741
    %v1744 = vsel %vm793, %v1743, %v1635
    %v1745 = vsel %vm793, %v1737, %v1636
    %v1746 = vmul.f32 %v803, %v1743
    %1748 = vrot.lane.b32.xlu0 %v1744, 64
    %v1749 = vpop.permute.xlu0 %1748
    %v1751 = vsel %vm168, %v940, %v1749
    %v1753 = vsel %vm86, %v1751, 0
    %1755 = vmatprep.subr.mxu0 0.0
    %1756 = vmatpush1.msra.mxu0 %v49
    %1757 = vmatprep.subr.mxu0 0.0
    %1758 = vmatpush1.msra.mxu0 %v50
    %1759 = vmatprep.subr.mxu0 0.0
    %1760 = vmatpush1.msra.mxu0 %v51
    %1761 = vmatprep.subr.mxu0 0.0
    %1762 = vmatpush1.msra.mxu0 %v52
    %1763 = vmatprep.subr.mxu0 0.0
    %1764 = vmatpush1.msra.mxu0 %v53
    %1765 = vmatprep.subr.mxu0 0.0
    %1766 = vmatpush1.msra.mxu0 %v54
    %1767 = vmatprep.subr.mxu0 0.0
    %1768 = vmatpush1.msra.mxu0 %v55
    %1769 = vmatprep.subr.mxu0 0.0
    %1770 = vmatpush1.msra.mxu0 %v56
    %1771 = vmatprep.subr.mxu0 0.0
    %1772 = vmatpush1.msra.mxu0 0.0
    %1773 = vmatprep.subr.mxu0 0.0
    %1774 = vmatpush1.msra.mxu0 0.0
    %1775 = vmatprep.subr.mxu0 0.0
    %1776 = vmatpush1.msra.mxu0 0.0
    %1777 = vmatprep.subr.mxu0 0.0
    %1778 = vmatpush1.msra.mxu0 0.0
    %1779 = vmatprep.subr.mxu0 0.0
    %1780 = vmatpush1.msra.mxu0 0.0
    %1781 = vmatprep.subr.mxu0 0.0
    %1782 = vmatpush1.msra.mxu0 0.0
    %1783 = vmatprep.subr.mxu0 0.0
    %1784 = vmatpush1.msra.mxu0 0.0
    %1785 = vmatprep.subr.mxu0 0.0
    %1786 = vmatpush1.msra.mxu0 0.0
    %1787 = vmatprep.subr.mxu0 0.0
    %1788 = vmatpush1.msra.mxu0 0.0
    %1789 = vmatprep.subr.mxu0 0.0
    %1790 = vmatpush1.msra.mxu0 0.0
    %1791 = vmatprep.subr.mxu0 0.0
    %1792 = vmatpush1.msra.mxu0 0.0
    %1793 = vmatprep.subr.mxu0 0.0
    %1794 = vmatpush1.msra.mxu0 0.0
    %1795 = vmatprep.subr.mxu0 0.0
    %1796 = vmatpush1.msra.mxu0 0.0
    %1797 = vmatprep.subr.mxu0 0.0
    %1798 = vmatpush1.msra.mxu0 0.0
    %1799 = vmatprep.subr.mxu0 0.0
    %1800 = vmatpush1.msra.mxu0 0.0
    %1801 = vmatprep.subr.mxu0 0.0
    %1802 = vmatpush1.msra.mxu0 0.0
    %1803 = vmatprep.subr.mxu0 0.0
    %1804 = vmatpush1.msra.mxu0 0.0
    %1805 = vmatprep.subr.mxu0 0.0
    %1806 = vmatpush1.msra.mxu0 0.0
    %1807 = vmatprep.subr.mxu0 0.0
    %1808 = vmatpush1.msra.mxu0 0.0
    %1809 = vmatprep.subr.mxu0 0.0
    %1810 = vmatpush1.msra.mxu0 0.0
    %1811 = vmatprep.subr.mxu0 0.0
    %1812 = vmatpush1.msra.mxu0 0.0
    %1813 = vmatprep.subr.mxu0 0.0
    %1814 = vmatpush1.msra.mxu0 0.0
    %1815 = vmatprep.subr.mxu0 0.0
    %1816 = vmatpush1.msra.mxu0 0.0
    %1817 = vmatprep.subr.mxu0 0.0
    %1818 = vmatpush1.msra.mxu0 0.0
    %1819 = vmatprep.mubr.f32.mxu0 0.0
    %1820 = vmatmul.mubr.f32.gmra.mrb[0].mxu0 %v1753
    %v1821 = vpop.f32.mrb[0].mxu0
    %v1822 = vadd.f32 %v1215, %v1821
    %v1823 = vpop.f32.mrb[0].mxu0
    %1824 = vdwg.mxu0
    %v1825 = vxor.u32 %v1822, 2147483648
    %v1826 = vmul.f32 %v1825, 1.442695
    %v1827 = vpow.pop %v1826
    %v1828 = vadd.f32 %v1827, 1.0
    %v1829 = vrcp.pop %v1828
    %v1830 = vmul.f32 1.0, %v1829
    %v1831 = vtanh.pop %v1822
    %v1832 = vmul.f32 %v1830, %v1745
    %1834 = vrot.lane.b32.xlu0 %v1831, 64
    %v1835 = vpop.permute.xlu0 %1834
    %v1837 = vmul.f32 %v1830, %v1835
    %1839 = vrot.lane.b32.xlu0 %v1837, 32
    %v1840 = vpop.permute.xlu0 %1839
    %v1842 = vadd.f32 %v1832, %v1840
    %v1843 = vtanh.pop %v1842
    %1845 = vrot.lane.b32.xlu0 %v1843, 64
    %v1846 = vpop.permute.xlu0 %1845
    %v1848 = vmul.f32 %v1830, %v1846
    %v1849 = vsel %vm917, %v1848, %v1744
    %v1850 = vsel %vm917, %v1842, %v1745
    %v1851 = vmul.f32 %v938, %v1848
    %1853 = vrot.lane.b32.xlu0 %v1849, 64
    %v1854 = vpop.permute.xlu0 %1853
    %v1856 = vsel %vm168, %v1071, %v1854
    %v1858 = vsel %vm86, %v1856, 0
    %1860 = vmatprep.subr.mxu0 0.0
    %1861 = vmatpush1.msra.mxu0 %v49
    %1862 = vmatprep.subr.mxu0 0.0
    %1863 = vmatpush1.msra.mxu0 %v50
    %1864 = vmatprep.subr.mxu0 0.0
    %1865 = vmatpush1.msra.mxu0 %v51
    %1866 = vmatprep.subr.mxu0 0.0
    %1867 = vmatpush1.msra.mxu0 %v52
    %1868 = vmatprep.subr.mxu0 0.0
    %1869 = vmatpush1.msra.mxu0 %v53
    %1870 = vmatprep.subr.mxu0 0.0
    %1871 = vmatpush1.msra.mxu0 %v54
    %1872 = vmatprep.subr.mxu0 0.0
    %1873 = vmatpush1.msra.mxu0 %v55
    %1874 = vmatprep.subr.mxu0 0.0
    %1875 = vmatpush1.msra.mxu0 %v56
    %1876 = vmatprep.subr.mxu0 0.0
    %1877 = vmatpush1.msra.mxu0 0.0
    %1878 = vmatprep.subr.mxu0 0.0
    %1879 = vmatpush1.msra.mxu0 0.0
    %1880 = vmatprep.subr.mxu0 0.0
    %1881 = vmatpush1.msra.mxu0 0.0
    %1882 = vmatprep.subr.mxu0 0.0
    %1883 = vmatpush1.msra.mxu0 0.0
    %1884 = vmatprep.subr.mxu0 0.0
    %1885 = vmatpush1.msra.mxu0 0.0
    %1886 = vmatprep.subr.mxu0 0.0
    %1887 = vmatpush1.msra.mxu0 0.0
    %1888 = vmatprep.subr.mxu0 0.0
    %1889 = vmatpush1.msra.mxu0 0.0
    %1890 = vmatprep.subr.mxu0 0.0
    %1891 = vmatpush1.msra.mxu0 0.0
    %1892 = vmatprep.subr.mxu0 0.0
    %1893 = vmatpush1.msra.mxu0 0.0
    %1894 = vmatprep.subr.mxu0 0.0
    %1895 = vmatpush1.msra.mxu0 0.0
    %1896 = vmatprep.subr.mxu0 0.0
    %1897 = vmatpush1.msra.mxu0 0.0
    %1898 = vmatprep.subr.mxu0 0.0
    %1899 = vmatpush1.msra.mxu0 0.0
    %1900 = vmatprep.subr.mxu0 0.0
    %1901 = vmatpush1.msra.mxu0 0.0
    %1902 = vmatprep.subr.mxu0 0.0
    %1903 = vmatpush1.msra.mxu0 0.0
    %1904 = vmatprep.subr.mxu0 0.0
    %1905 = vmatpush1.msra.mxu0 0.0
    %1906 = vmatprep.subr.mxu0 0.0
    %1907 = vmatpush1.msra.mxu0 0.0
    %1908 = vmatprep.subr.mxu0 0.0
    %1909 = vmatpush1.msra.mxu0 0.0
    %1910 = vmatprep.subr.mxu0 0.0
    %1911 = vmatpush1.msra.mxu0 0.0
    %1912 = vmatprep.subr.mxu0 0.0
    %1913 = vmatpush1.msra.mxu0 0.0
    %1914 = vmatprep.subr.mxu0 0.0
    %1915 = vmatpush1.msra.mxu0 0.0
    %1916 = vmatprep.subr.mxu0 0.0
    %1917 = vmatpush1.msra.mxu0 0.0
    %1918 = vmatprep.subr.mxu0 0.0
    %1919 = vmatpush1.msra.mxu0 0.0
    %1920 = vmatprep.subr.mxu0 0.0
    %1921 = vmatpush1.msra.mxu0 0.0
    %1922 = vmatprep.subr.mxu0 0.0
    %1923 = vmatpush1.msra.mxu0 0.0
    %1924 = vmatprep.mubr.f32.mxu0 0.0
    %1925 = vmatmul.mubr.f32.gmra.mrb[0].mxu0 %v1858
    %v1926 = vpop.f32.mrb[0].mxu0
    %v1927 = vadd.f32 %v1215, %v1926
    %v1928 = vpop.f32.mrb[0].mxu0
    %1929 = vdwg.mxu0
    %v1930 = vxor.u32 %v1927, 2147483648
    %v1931 = vmul.f32 %v1930, 1.442695
    %v1932 = vpow.pop %v1931
    %v1933 = vadd.f32 %v1932, 1.0
    %v1934 = vrcp.pop %v1933
    %v1935 = vmul.f32 1.0, %v1934
    %v1936 = vtanh.pop %v1927
    %v1937 = vmul.f32 %v1935, %v1850
    %1939 = vrot.lane.b32.xlu0 %v1936, 64
    %v1940 = vpop.permute.xlu0 %1939
    %v1942 = vmul.f32 %v1935, %v1940
    %1944 = vrot.lane.b32.xlu0 %v1942, 32
    %v1945 = vpop.permute.xlu0 %1944
    %v1947 = vadd.f32 %v1937, %v1945
    %v1948 = vtanh.pop %v1947
    %1950 = vrot.lane.b32.xlu0 %v1948, 64
    %v1951 = vpop.permute.xlu0 %1950
    %v1953 = vmul.f32 %v1935, %v1951
    %v1954 = vsel %vm1052, %v1953, %v1849
    %v1955 = vsel %vm1052, %v1947, %v1850
    %v1956 = vmul.f32 %v1069, %v1953
    %1958 = vrot.lane.b32.xlu0 %v1954, 64
    %v1959 = vpop.permute.xlu0 %1958
    %v1961 = vsel %vm168, %v1202, %v1959
    %v1963 = vsel %vm86, %v1961, 0
    %1965 = vmatprep.subr.mxu0 0.0
    %1966 = vmatpush1.msra.mxu0 %v49
    %1967 = vmatprep.subr.mxu0 0.0
    %1968 = vmatpush1.msra.mxu0 %v50
    %1969 = vmatprep.subr.mxu0 0.0
    %1970 = vmatpush1.msra.mxu0 %v51
    %1971 = vmatprep.subr.mxu0 0.0
    %1972 = vmatpush1.msra.mxu0 %v52
    %1973 = vmatprep.subr.mxu0 0.0
    %1974 = vmatpush1.msra.mxu0 %v53
    %1975 = vmatprep.subr.mxu0 0.0
    %1976 = vmatpush1.msra.mxu0 %v54
    %1977 = vmatprep.subr.mxu0 0.0
    %1978 = vmatpush1.msra.mxu0 %v55
    %1979 = vmatprep.subr.mxu0 0.0
    %1980 = vmatpush1.msra.mxu0 %v56
    %1981 = vmatprep.subr.mxu0 0.0
    %1982 = vmatpush1.msra.mxu0 0.0
    %1983 = vmatprep.subr.mxu0 0.0
    %1984 = vmatpush1.msra.mxu0 0.0
    %1985 = vmatprep.subr.mxu0 0.0
    %1986 = vmatpush1.msra.mxu0 0.0
    %1987 = vmatprep.subr.mxu0 0.0
    %1988 = vmatpush1.msra.mxu0 0.0
    %1989 = vmatprep.subr.mxu0 0.0
    %1990 = vmatpush1.msra.mxu0 0.0
    %1991 = vmatprep.subr.mxu0 0.0
    %1992 = vmatpush1.msra.mxu0 0.0
    %1993 = vmatprep.subr.mxu0 0.0
    %1994 = vmatpush1.msra.mxu0 0.0
    %1995 = vmatprep.subr.mxu0 0.0
    %1996 = vmatpush1.msra.mxu0 0.0
    %1997 = vmatprep.subr.mxu0 0.0
    %1998 = vmatpush1.msra.mxu0 0.0
    %1999 = vmatprep.subr.mxu0 0.0
    %2000 = vmatpush1.msra.mxu0 0.0
    %2001 = vmatprep.subr.mxu0 0.0
    %2002 = vmatpush1.msra.mxu0 0.0
    %2003 = vmatprep.subr.mxu0 0.0
    %2004 = vmatpush1.msra.mxu0 0.0
    %2005 = vmatprep.subr.mxu0 0.0
    %2006 = vmatpush1.msra.mxu0 0.0
    %2007 = vmatprep.subr.mxu0 0.0
    %2008 = vmatpush1.msra.mxu0 0.0
    %2009 = vmatprep.subr.mxu0 0.0
    %2010 = vmatpush1.msra.mxu0 0.0
    %2011 = vmatprep.subr.mxu0 0.0
    %2012 = vmatpush1.msra.mxu0 0.0
    %2013 = vmatprep.subr.mxu0 0.0
    %2014 = vmatpush1.msra.mxu0 0.0
    %2015 = vmatprep.subr.mxu0 0.0
    %2016 = vmatpush1.msra.mxu0 0.0
    %2017 = vmatprep.subr.mxu0 0.0
    %2018 = vmatpush1.msra.mxu0 0.0
    %2019 = vmatprep.subr.mxu0 0.0
    %2020 = vmatpush1.msra.mxu0 0.0
    %2021 = vmatprep.subr.mxu0 0.0
    %2022 = vmatpush1.msra.mxu0 0.0
    %2023 = vmatprep.subr.mxu0 0.0
    %2024 = vmatpush1.msra.mxu0 0.0
    %2025 = vmatprep.subr.mxu0 0.0
    %2026 = vmatpush1.msra.mxu0 0.0
    %2027 = vmatprep.subr.mxu0 0.0
    %2028 = vmatpush1.msra.mxu0 0.0
    %2029 = vmatprep.mubr.f32.mxu0 0.0
    %2030 = vmatmul.mubr.f32.gmra.mrb[0].mxu0 %v1963
    %v2031 = vpop.f32.mrb[0].mxu0
    %v2032 = vadd.f32 %v1215, %v2031
    %v2033 = vpop.f32.mrb[0].mxu0
    %2034 = vdwg.mxu0
    %v2035 = vxor.u32 %v2032, 2147483648
    %v2036 = vmul.f32 %v2035, 1.442695
    %v2037 = vpow.pop %v2036
    %v2038 = vadd.f32 %v2037, 1.0
    %v2039 = vrcp.pop %v2038
    %v2040 = vmul.f32 1.0, %v2039
    %v2041 = vtanh.pop %v2032
    %v2042 = vmul.f32 %v2040, %v1955
    %2044 = vrot.lane.b32.xlu0 %v2041, 64
    %v2045 = vpop.permute.xlu0 %2044
    %v2047 = vmul.f32 %v2040, %v2045
    %2049 = vrot.lane.b32.xlu0 %v2047, 32
    %v2050 = vpop.permute.xlu0 %2049
    %v2052 = vadd.f32 %v2042, %v2050
    %v2053 = vtanh.pop %v2052
    %2055 = vrot.lane.b32.xlu0 %v2053, 64
    %v2056 = vpop.permute.xlu0 %2055
    %v2058 = vmul.f32 %v2040, %v2056
    %v2059 = vsel %vm1183, %v2058, %v1954
    %v2060 = vsel %vm1183, %v2052, %v1955
    %v2061 = vmul.f32 %v1200, %v2058
    %v2063 = vrot.slane %v1427, 7
    %v2066 = vrot.slane %v1532, 6
    %v2069 = vrot.slane %v1637, 5
    %v2072 = vrot.slane %v1746, 4
    %v2075 = vrot.slane %v1851, 3
    %v2078 = vrot.slane %v1956, 2
    %v2081 = vrot.slane %v2061, 1
    %v2084 = vrot.slane %v1322, 1
    %v2086 = vrot.slane %v1532, 7
    %v2088 = vrot.slane %v1637, 6
    %v2090 = vrot.slane %v1746, 5
    %v2092 = vrot.slane %v1851, 4
    %v2094 = vrot.slane %v1956, 3
    %v2096 = vrot.slane %v2061, 2
    %vm2098 = vcmask 1040384
    %v2099 = vsel %vm2098, %v1322, %v2063
    %vm2100 = vcmask 1041408
    %v2101 = vsel %vm2100, %v2099, %v2066
    %vm2102 = vcmask 1042432
    %v2103 = vsel %vm2102, %v2101, %v2069
    %vm2104 = vcmask 1043456
    %v2105 = vsel %vm2104, %v2103, %v2072
    %vm2106 = vcmask 1044480
    %v2107 = vsel %vm2106, %v2105, %v2075
    %vm2108 = vcmask 1045504
    %v2109 = vsel %vm2108, %v2107, %v2078
    %vm2110 = vcmask 1046528
    %v2111 = vsel %vm2110, %v2109, %v2081
    %v2112 = vsel %vm2098, %v2084, %v1427
    %v2113 = vsel %vm2100, %v2112, %v2086
    %v2114 = vsel %vm2102, %v2113, %v2088
    %v2115 = vsel %vm2104, %v2114, %v2090
    %v2116 = vsel %vm2106, %v2115, %v2092
    %v2117 = vsel %vm2108, %v2116, %v2094
    %v2118 = vsel %vm2110, %v2117, %v2096
    %v2119 = vlaneseq
    %v2120 = vshrl.u32 %v2119, 7
    %v2121 = vsub.s32 0, %v2120
    %v2122 = vrot.slane %v63, %v2121
    %2125 = vrot.lane.b32.xlu0 %v2111, 32
    %v2126 = vpop.permute.xlu0 %2125
    %2127 = vrot.lane.b32.xlu0 %v2118, 32
    %v2128 = vpop.permute.xlu0 %2127
    %v2129 = vsel %vm168, %v2126, 0
    %v2131 = vsel %vm168, %v2128, 0
    %2133 = vmatprep.subr.mxu0 0.0
    %2134 = vmatpush1.msra.mxu0 %v57
    %2135 = vmatprep.subr.mxu0 0.0
    %2136 = vmatpush1.msra.mxu0 %v58
    %2137 = vmatprep.subr.mxu0 0.0
    %2138 = vmatpush1.msra.mxu0 %v59
    %2139 = vmatprep.subr.mxu0 0.0
    %2140 = vmatpush1.msra.mxu0 %v60
    %2141 = vmatprep.subr.mxu0 0.0
    %2142 = vmatpush1.msra.mxu0 0.0
    %2143 = vmatprep.subr.mxu0 0.0
    %2144 = vmatpush1.msra.mxu0 0.0
    %2145 = vmatprep.subr.mxu0 0.0
    %2146 = vmatpush1.msra.mxu0 0.0
    %2147 = vmatprep.subr.mxu0 0.0
    %2148 = vmatpush1.msra.mxu0 0.0
    %2149 = vmatprep.subr.mxu0 0.0
    %2150 = vmatpush1.msra.mxu0 0.0
    %2151 = vmatprep.subr.mxu0 0.0
    %2152 = vmatpush1.msra.mxu0 0.0
    %2153 = vmatprep.subr.mxu0 0.0
    %2154 = vmatpush1.msra.mxu0 0.0
    %2155 = vmatprep.subr.mxu0 0.0
    %2156 = vmatpush1.msra.mxu0 0.0
    %2157 = vmatprep.subr.mxu0 0.0
    %2158 = vmatpush1.msra.mxu0 0.0
    %2159 = vmatprep.subr.mxu0 0.0
    %2160 = vmatpush1.msra.mxu0 0.0
    %2161 = vmatprep.subr.mxu0 0.0
    %2162 = vmatpush1.msra.mxu0 0.0
    %2163 = vmatprep.subr.mxu0 0.0
    %2164 = vmatpush1.msra.mxu0 0.0
    %2165 = vmatprep.subr.mxu0 0.0
    %2166 = vmatpush1.msra.mxu0 0.0
    %2167 = vmatprep.subr.mxu0 0.0
    %2168 = vmatpush1.msra.mxu0 0.0
    %2169 = vmatprep.subr.mxu0 0.0
    %2170 = vmatpush1.msra.mxu0 0.0
    %2171 = vmatprep.subr.mxu0 0.0
    %2172 = vmatpush1.msra.mxu0 0.0
    %2173 = vmatprep.subr.mxu0 0.0
    %2174 = vmatpush1.msra.mxu0 0.0
    %2175 = vmatprep.subr.mxu0 0.0
    %2176 = vmatpush1.msra.mxu0 0.0
    %2177 = vmatprep.subr.mxu0 0.0
    %2178 = vmatpush1.msra.mxu0 0.0
    %2179 = vmatprep.subr.mxu0 0.0
    %2180 = vmatpush1.msra.mxu0 0.0
    %2181 = vmatprep.subr.mxu0 0.0
    %2182 = vmatpush1.msra.mxu0 0.0
    %2183 = vmatprep.subr.mxu0 0.0
    %2184 = vmatpush1.msra.mxu0 0.0
    %2185 = vmatprep.subr.mxu0 0.0
    %2186 = vmatpush1.msra.mxu0 0.0
    %2187 = vmatprep.subr.mxu0 0.0
    %2188 = vmatpush1.msra.mxu0 0.0
    %2189 = vmatprep.subr.mxu0 0.0
    %2190 = vmatpush1.msra.mxu0 0.0
    %2191 = vmatprep.subr.mxu0 0.0
    %2192 = vmatpush1.msra.mxu0 0.0
    %2193 = vmatprep.subr.mxu0 0.0
    %2194 = vmatpush1.msra.mxu0 0.0
    %2195 = vmatprep.subr.mxu0 0.0
    %2196 = vmatpush1.msra.mxu0 0.0
    %2197 = vmatprep.mubr.f32.mxu0 0.0
    %2198 = vmatmul.mubr.f32.gmra.mrb[0].mxu0 %v2129
    %v2199 = vpop.f32.mrb[0].mxu0
    %v2200 = vadd.f32 %v2122, %v2199
    %v2201 = vpop.f32.mrb[0].mxu0
    %2202 = vmatprep.mubr.f32.mxu0 0.0
    %2203 = vmatmul.mubr.f32.gmra.mrb[0].mxu0 %v2131
    %v2204 = vpop.f32.mrb[0].mxu0
    %v2205 = vadd.f32 %v2122, %v2204
    %v2206 = vpop.f32.mrb[0].mxu0
    %2207 = vdwg.mxu0
    %2208 = vst [vmem:[#allocation5] sm:$0xff] %v2200
    %2209 = vst [vmem:[#allocation5 + $0x8] sm:$0xff] %v2205
    %vm2210 = vcmask 254976
    %2211 = vst.msk [vmem:[%s5] sm:$0x3] %vm2210, %v1189
    %2213 = vrot.lane.b32.xlu0 %v2059, 32
    %v2214 = vpop.permute.xlu0 %2213
    %2216 = vst.msk [vmem:[%s5 + $0x2] sm:$0x3] %vm2210, %v2214
    %2217 = vst.msk [vmem:[%s5 + $0x4] sm:$0x3] %vm2210, %v1195
    %2219 = vrot.lane.b32.xlu0 %v2060, 96
    %v2220 = vpop.permute.xlu0 %2219
    %2222 = vst.msk [vmem:[%s5 + $0x6] sm:$0x3] %vm2210, %v2220
    // Predicated region
    $region22: #{chatbot_forward.1} parent=1 // pred_check
      _
    $region23: #{chatbot_forward.1} parent=1 // pred_check_branch
      %2224 = sbr.rel (0) target = $region25
    $region24: #{chatbot_forward.1} parent=1 // pred_region
      %s2226 = ssub.s32 256, 256
      %2227 = vsyncadd [#allocation4], %s2226
      %s2228 = sshll.u32 [#allocation5], 4
      %s2229 = int_to_ptr.vmem [resolvable:$true] %s2228
      %2234 = dma.vmem_to_hbm [thread:$0]  %s2229, 256, %s4, [#allocation4], 128, 128, 8
    $region25: #{chatbot_forward.1} parent=1 // pred_fallthru
      _
    // Predicated region
    $region26: #{chatbot_forward.1} parent=1 // pred_check
      _
    $region27: #{chatbot_forward.1} parent=1 // pred_check_branch
      %2236 = sbr.rel (0) target = $region29
    $region28: #{chatbot_forward.1} parent=1 // pred_region
      _
    $region29: #{chatbot_forward.1} parent=1 // pred_fallthru
      _
    // Predicated region
    $region30: #{chatbot_forward.1} parent=1 // pred_check
      _
    $region31: #{chatbot_forward.1} parent=1 // pred_check_branch
      %2238 = sbr.rel (0) target = $region33
    $region32: #{chatbot_forward.1} parent=1 // pred_region
      %2239 = dma.done [#allocation4], 256
    $region33: #{chatbot_forward.1} parent=1 // pred_fallthru
      _
    // Predicated region
    $region34: #{chatbot_forward.1} parent=1 // pred_check
      _
    $region35: #{chatbot_forward.1} parent=1 // pred_check_branch
      %2241 = sbr.rel (0) target = $region37
    $region36: #{chatbot_forward.1} parent=1 // pred_region
      _
    $region37: #{chatbot_forward.1} parent=1 // pred_fallthru
      _
    %2242 = vsyncpa [#allocation3], 1
    %2243 = vsyncpa [#allocation4], 1

</llo_original>
